<compile_context>
chip_gen: v7x
topology: tpu7x:2x2x1
jax: 0.10.0
libtpu: 0.0.40
codegen_flags: <defaults>
</compile_context>

<pallas_src>
import functools

import jax
import jax.numpy as jnp
import numpy as np
from jax.experimental import pallas as pl
from jax.experimental.pallas import tpu as pltpu


def _model3_kernel(
    emb_ref,        # (S*Bp, E)   time-major, batch-padded embeddings (f32/bf16)
    w_x_ref,        # (E, NPROJ)  [W_se | 0 pad | W_ih]  (same dtype as emb)
    w_rec_ref,      # (2H, NPROJ) block-diag [[W_sc, 0], [0, W_hh]]  (f32)
    b_all_ref,      # (1, NPROJ)  [b_s + w_sa[0] | 0 pad | b_ih + b_hh]
    w_r_ref,        # (SVP, 2)    fc_read_probs weight (zero-padded rows)
    b_r_ref,        # (1, 2)
    w_c1_ref, b_c1_ref, w_c2_ref, b_c2_ref,   # fc_classifier
    mask_ref,       # (S*Bp, 1)   1.0 for real batch rows, 0.0 for pad rows
    cls_out_ref,    # (Bp, 2)
    loss_out_ref,   # (1, 1)
    xproj_sc,       # VMEM scratch (S*Bp, NPROJ) f32
    *, seq_len, batch_pad, batch_real, hidden, svp,
):
    f32 = jnp.float32
    H = hidden

    # ---- Phase 1 (hoisted): one big MXU matmul for all time steps, with both
    # biases folded in by a single broadcast add. -----------------------------
    xproj_sc[...] = (jnp.dot(emb_ref[...], w_x_ref[...],
                             preferred_element_type=f32) + b_all_ref[...])

    # Loop-invariant recurrent weight, read once.
    # TODO(synk): hold w_rec resident in the MXU across the time loop via
    # pltpu.matmul_push_rhs / matmul_acc_lhs / matmul_pop instead of jnp.dot.
    w_rec = w_rec_ref[...]

    # Recurrent state packed lane-contiguously: c in lanes [0:H], h in [H:2H].
    ch0 = jnp.zeros((batch_pad, 2 * H), f32)

    def step(t, ch):
        start = pl.multiple_of(t * batch_pad, batch_pad)
        xp = xproj_sc[pl.ds(start, batch_pad), :]               # (Bp, NPROJ)

        # Single fused recurrent matmul for state-FC and LSTM gates.
        rec = jnp.dot(ch, w_rec, preferred_element_type=f32)    # (Bp, NPROJ)

        c = ch[:, :H]

        # state_vector = ReLU([x, old_c, old_action] @ W_state + b_state)
        # (action one_hot(0) and biases already folded into xp).
        sv = jnp.maximum(xp[:, :svp] + rec[:, :svp], 0.0)       # (Bp, SVP)
        # Stash sv into the now-dead state-FC columns of the scratch so the
        # read-probs / entropy loss can be computed once after the loop.
        xproj_sc[pl.ds(start, batch_pad), :svp] = sv

        # LSTMCell — PyTorch gate order (i, f, g, o). Activations on the whole
        # (Bp, 4H) = (8, 128) gate register, then lane slices.
        gates = xp[:, svp:] + rec[:, svp:]                      # (Bp, 4H)
        sig = jax.nn.sigmoid(gates)
        tnh = jnp.tanh(gates)
        i_g = sig[:, 0:H]
        f_g = sig[:, H:2 * H]
        g_g = tnh[:, 2 * H:3 * H]
        o_g = sig[:, 3 * H:4 * H]
        c_new = f_g * c + i_g * g_g
        h_new = o_g * jnp.tanh(c_new)
        return jnp.concatenate([c_new, h_new], axis=1)

    ch = jax.lax.fori_loop(0, seq_len, step, ch0, unroll=min(8, seq_len))
    h = ch[:, H:]

    # ---- Hoisted fc_read_probs + cross-entropy vs [0.5, 0.5], for ALL (t, b)
    # rows in one matmul (log-softmax form):
    #   -0.5 * sum_j log softmax(logits)_j = logsumexp(logits) - 0.5*(l0 + l1)
    sv_all = xproj_sc[:, :svp]                                  # (S*Bp, SVP)
    logits = (jnp.dot(sv_all, w_r_ref[...], preferred_element_type=f32)
              + b_r_ref[...])                                   # (S*Bp, 2)
    m = jnp.max(logits, axis=-1, keepdims=True)
    lse = m + jnp.log(jnp.sum(jnp.exp(logits - m), axis=-1, keepdims=True))
    row_loss = lse - 0.5 * jnp.sum(logits, axis=-1, keepdims=True)
    loss_out_ref[...] = (jnp.sum(row_loss * mask_ref[...], keepdims=True)
                         * (1.0 / batch_real))

    # ---- fc_classifier: Linear -> ReLU -> Linear -> Softmax (dropout = id).
    z = jnp.maximum(jnp.dot(h, w_c1_ref[...], preferred_element_type=f32)
                    + b_c1_ref[...], 0.0)
    lg = (jnp.dot(z, w_c2_ref[...], preferred_element_type=f32)
          + b_c2_ref[...])
    lg = lg - jnp.max(lg, axis=-1, keepdims=True)
    e = jnp.exp(lg)
    cls_out_ref[...] = (e / jnp.sum(e, axis=-1, keepdims=True)).astype(
        cls_out_ref.dtype)


@functools.partial(jax.jit, static_argnames=("phase1_bf16",))
def model3_supervised_pallas(emb_seq, params, phase1_bf16=True):
    """Model3.forward_supervised (dropout = identity, entropy_loss_type == 2).

    emb_seq: (S, B, E) time-major embedded sequence.

    NOTE (supervised path only): old_action is ALWAYS one_hot(0) == [1, 0] in
    forward_supervised, so w_sa row 0 is folded into the state bias here. Do
    NOT reuse this kernel for the RL path (forward_rl), where the action
    changes per step.
    """
    S, B, E = emb_seq.shape
    H = params["w_hh"].shape[0]
    SV = params["w_se"].shape[1]

    B_P = ((B + 7) // 8) * 8                    # pad batch to 8-sublane floor
    SVP = ((SV + 127) // 128) * 128             # pad state-vector cols to 128
    NPROJ = SVP + 4 * H
    f32 = jnp.float32
    x_dt = jnp.bfloat16 if phase1_bf16 else f32

    # Batch-pad + flatten to (S*Bp, E); padded rows are zeros, masked out of
    # the loss and sliced off the class output.
    # TODO(synk): for large S, stream the embeddings from HBM (pl.ANY +
    # pltpu.emit_pipeline over time-chunks) instead of full VMEM residency.
    emb_p = jnp.zeros((S, B_P, E), f32).at[:, :B, :].set(emb_seq.astype(f32))
    emb_2d = emb_p.reshape(S * B_P, E).astype(x_dt)

    # Hoisted x-projection weight: [W_se | 0 pad | W_ih] -> (E, NPROJ).
    w_x = jnp.zeros((E, NPROJ), f32)
    w_x = w_x.at[:, :SV].set(params["w_se"].astype(f32))
    w_x = w_x.at[:, SVP:].set(params["w_ih"].astype(f32))
    w_x = w_x.astype(x_dt)

    # Fused recurrent weight: block-diagonal [[W_sc, 0], [0, W_hh]]. Kept f32:
    # the carry feeds back through it (see correctness notes in the review).
    w_rec = jnp.zeros((2 * H, NPROJ), f32)
    w_rec = w_rec.at[:H, :SV].set(params["w_sc"].astype(f32))
    w_rec = w_rec.at[H:, SVP:].set(params["w_hh"].astype(f32))

    # Single fused bias, added once in Phase 1:
    #   [ b_s + w_sa[0]  |  0 pad  |  b_ih + b_hh ]
    b_all = jnp.zeros((1, NPROJ), f32)
    b_all = b_all.at[:, :SV].set(
        (params["b_s"] + params["w_sa"][0:1, :]).astype(f32))
    b_all = b_all.at[:, SVP:].set(params["b_lstm"].astype(f32))

    w_r = jnp.zeros((SVP, 2), f32).at[:SV, :].set(params["w_r"].astype(f32))

    # Validity mask for the (time-major, batch-padded) loss rows.
    loss_mask = jnp.broadcast_to((jnp.arange(B_P) < B)[None, :], (S, B_P))
    loss_mask = loss_mask.reshape(S * B_P, 1).astype(f32)

    kernel = functools.partial(_model3_kernel, seq_len=S, batch_pad=B_P,
                               batch_real=B, hidden=H, svp=SVP)

    # VMEM budget (grid-less: no input double-buffering); leave headroom.
    xb = 2 if phase1_bf16 else 4
    need = (S * B_P * E * xb + E * NPROJ * xb
            + S * B_P * NPROJ * 4 + 2 * H * NPROJ * 4 + (1 << 20))
    vmem_limit = int(min(128 * 2 ** 20, max(32 * 2 ** 20, 2 * need)))

    vmem_spec = pl.BlockSpec(memory_space=pltpu.MemorySpace.VMEM)
    cls, loss = pl.pallas_call(
        kernel,
        out_shape=(jax.ShapeDtypeStruct((B_P, 2), f32),
                   jax.ShapeDtypeStruct((1, 1), f32)),
        in_specs=[vmem_spec] * 11,
        out_specs=(vmem_spec, vmem_spec),
        scratch_shapes=[pltpu.VMEM((S * B_P, NPROJ), f32)],
        compiler_params=pltpu.CompilerParams(vmem_limit_bytes=vmem_limit),
    )(emb_2d, w_x, w_rec, b_all, w_r,
      params["b_r"].astype(f32), params["w_c1"].astype(f32),
      params["b_c1"].astype(f32), params["w_c2"].astype(f32),
      params["b_c2"].astype(f32), loss_mask)

    # TODO(synk): for B >= 16 on v7x, add a batch-tile grid axis with
    # dimension_semantics=("parallel",) so both TensorCores run batch slices.
    return {"class_probabilities": cls[:B], "full_read_losses": loss[0, 0]}


def model3_supervised_reference(emb_seq, params):
    """Pure-JAX reference of forward_supervised (dropout = identity)."""
    S, B, E = emb_seq.shape
    H = params["w_hh"].shape[0]
    h = jnp.zeros((B, H), jnp.float32)
    c = jnp.zeros((B, H), jnp.float32)
    loss_sum = 0.0
    for t in range(S):
        x = emb_seq[t]
        sv = (x @ params["w_se"] + c @ params["w_sc"]
              + params["w_sa"][0:1, :] + params["b_s"])
        sv = jnp.maximum(sv, 0.0)
        probs = jax.nn.softmax(sv @ params["w_r"] + params["b_r"], axis=-1)
        loss_sum = loss_sum + jnp.sum(-0.5 * jnp.sum(jnp.log(probs), axis=-1))
        gates = x @ params["w_ih"] + h @ params["w_hh"] + params["b_lstm"]
        i_g = jax.nn.sigmoid(gates[:, 0:H])
        f_g = jax.nn.sigmoid(gates[:, H:2 * H])
        g_g = jnp.tanh(gates[:, 2 * H:3 * H])
        o_g = jax.nn.sigmoid(gates[:, 3 * H:4 * H])
        c = f_g * c + i_g * g_g
        h = o_g * jnp.tanh(c)
    z = jnp.maximum(h @ params["w_c1"] + params["b_c1"], 0.0)
    cls = jax.nn.softmax(z @ params["w_c2"] + params["b_c2"], axis=-1)
    return {"class_probabilities": cls, "full_read_losses": loss_sum / B}


if __name__ == "__main__":
    # Small config: vocab=50, word_embedding_size=32, lstm_hidden_size=32,
    # state_vector_size=32, batch=4, seq=8.
    V, E, H, SV = 50, 32, 32, 32
    B, S = 4, 8

    key = jax.random.PRNGKey(0)
    ks = jax.random.split(key, 16)
    scale = 0.1
    params = {
        "w_se":   scale * jax.random.normal(ks[0], (E, SV), jnp.float32),
        "w_sc":   scale * jax.random.normal(ks[1], (H, SV), jnp.float32),
        "w_sa":   scale * jax.random.normal(ks[2], (2, SV), jnp.float32),
        "b_s":    scale * jax.random.normal(ks[3], (1, SV), jnp.float32),
        "w_r":    scale * jax.random.normal(ks[4], (SV, 2), jnp.float32),
        "b_r":    scale * jax.random.normal(ks[5], (1, 2), jnp.float32),
        "w_ih":   scale * jax.random.normal(ks[6], (E, 4 * H), jnp.float32),
        "w_hh":   scale * jax.random.normal(ks[7], (H, 4 * H), jnp.float32),
        "b_lstm": scale * jax.random.normal(ks[8], (1, 4 * H), jnp.float32),
        "w_c1":   scale * jax.random.normal(ks[9], (H, H), jnp.float32),
        "b_c1":   scale * jax.random.normal(ks[10], (1, H), jnp.float32),
        "w_c2":   scale * jax.random.normal(ks[11], (H, 2), jnp.float32),
        "b_c2":   scale * jax.random.normal(ks[12], (1, 2), jnp.float32),
    }
    embedding_matrix = scale * jax.random.normal(ks[13], (V, E), jnp.float32)
    features = jax.random.randint(ks[14], (B, S), 0, V)   # batch x max_seq_len

    # Glue: embedding lookup + permute(1,0,2) -> time-major (S, B, E).
    # Dropout = identity (eval).
    emb_seq = jnp.transpose(embedding_matrix[features], (1, 0, 2)).astype(
        jnp.float32)

    ref = model3_supervised_reference(emb_seq, params)

    # f32 Phase-1 path: tight check against the pure-JAX reference.
    out32 = model3_supervised_pallas(emb_seq, params, phase1_bf16=False)
    jax.block_until_ready(out32)
    np.testing.assert_allclose(np.asarray(out32["class_probabilities"]),
                               np.asarray(ref["class_probabilities"]),
                               rtol=1e-3, atol=1e-4)
    np.testing.assert_allclose(np.asarray(out32["full_read_losses"]),
                               np.asarray(ref["full_read_losses"]),
                               rtol=1e-3, atol=1e-4)

    # bf16 Phase-1 path (v6e/v7x MXU throughput): looser tolerance.
    out16 = model3_supervised_pallas(emb_seq, params, phase1_bf16=True)
    jax.block_until_ready(out16)
    np.testing.assert_allclose(np.asarray(out16["class_probabilities"]),
                               np.asarray(ref["class_probabilities"]),
                               rtol=2e-2, atol=2e-3)
    np.testing.assert_allclose(np.asarray(out16["full_read_losses"]),
                               np.asarray(ref["full_read_losses"]),
                               rtol=2e-2, atol=2e-3)

    print("KERNEL_OK")
</pallas_src>

<mosaic_0001>
module attributes {stable_mosaic.version = 11 : i64} {
  func.func @_model3_kernel(%arg0: memref<64x32xf32, #tpu.memory_space<vmem>>, %arg1: memref<32x256xf32, #tpu.memory_space<vmem>>, %arg2: memref<64x256xf32, #tpu.memory_space<vmem>>, %arg3: memref<1x256xf32, #tpu.memory_space<vmem>>, %arg4: memref<128x2xf32, #tpu.memory_space<vmem>>, %arg5: memref<1x2xf32, #tpu.memory_space<vmem>>, %arg6: memref<32x32xf32, #tpu.memory_space<vmem>>, %arg7: memref<1x32xf32, #tpu.memory_space<vmem>>, %arg8: memref<32x2xf32, #tpu.memory_space<vmem>>, %arg9: memref<1x2xf32, #tpu.memory_space<vmem>>, %arg10: memref<64x1xf32, #tpu.memory_space<vmem>>, %arg11: memref<8x2xf32, #tpu.memory_space<vmem>>, %arg12: memref<1x1xf32, #tpu.memory_space<vmem>>, %arg13: memref<64x256xf32, #tpu.memory_space<vmem>>) attributes {dimension_semantics = [], scalar_prefetch = 0 : i64, scratch_operands = 1 : i64, tpu.core_type = #tpu.core_type<tc>} {
    %c0 = arith.constant 0 : index
    %c0_0 = arith.constant 0 : index
    %0 = vector.load %arg0[%c0, %c0_0] : memref<64x32xf32, #tpu.memory_space<vmem>>, vector<64x32xf32>
    %c0_1 = arith.constant 0 : index
    %c0_2 = arith.constant 0 : index
    %1 = vector.load %arg1[%c0_1, %c0_2] : memref<32x256xf32, #tpu.memory_space<vmem>>, vector<32x256xf32>
    %cst = arith.constant dense<0.000000e+00> : vector<64x256xf32>
    %2 = tpu.matmul %0, %1, %cst {dimension_numbers = #tpu.dot_dimension_numbers<[1], [0], [0], [1], [0, 0, 1, 1], [], []>} : vector<64x32xf32>, vector<32x256xf32>, vector<64x256xf32> -> vector<64x256xf32>
    %c0_3 = arith.constant 0 : index
    %c0_4 = arith.constant 0 : index
    %3 = vector.load %arg3[%c0_3, %c0_4] : memref<1x256xf32, #tpu.memory_space<vmem>>, vector<1x256xf32>
    %4 = vector.broadcast %3 : vector<1x256xf32> to vector<64x256xf32>
    %5 = arith.addf %2, %4 : vector<64x256xf32>
    %c0_5 = arith.constant 0 : index
    %c0_6 = arith.constant 0 : index
    %6 = vector.load %arg13[%c0_5, %c0_6] : memref<64x256xf32, #tpu.memory_space<vmem>>, vector<64x256xf32>
    tpu.vector_store %arg13[%c0_5, %c0_6], %5 {strides = array<i32>} : memref<64x256xf32, #tpu.memory_space<vmem>>, vector<64x256xf32>,
    %c0_7 = arith.constant 0 : index
    %c0_8 = arith.constant 0 : index
    %7 = vector.load %arg2[%c0_7, %c0_8] : memref<64x256xf32, #tpu.memory_space<vmem>>, vector<64x256xf32>
    %cst_9 = arith.constant 0.000000e+00 : f32
    %8 = vector.broadcast %cst_9 : f32 to vector<8x64xf32>
    %c0_i32 = arith.constant 0 : i32
    %c8_i32 = arith.constant 8 : i32
    %9 = arith.muli %c0_i32, %c8_i32 : i32
    %10 = tpu.assume_multiple %9, 8 : i32
    %11 = arith.index_cast %10 : i32 to index
    %c0_10 = arith.constant 0 : index
    %12 = vector.load %arg13[%11, %c0_10] : memref<64x256xf32, #tpu.memory_space<vmem>>, vector<8x256xf32>
    %cst_11 = arith.constant dense<0.000000e+00> : vector<8x256xf32>
    %13 = tpu.matmul %8, %7, %cst_11 {dimension_numbers = #tpu.dot_dimension_numbers<[1], [0], [0], [1], [0, 0, 1, 1], [], []>} : vector<8x64xf32>, vector<64x256xf32>, vector<8x256xf32> -> vector<8x256xf32>
    %14 = vector.extract_strided_slice %8 {offsets = [0, 0], sizes = [8, 32], strides = [1, 1]} : vector<8x64xf32> to vector<8x32xf32>
    %15 = vector.extract_strided_slice %12 {offsets = [0, 0], sizes = [8, 128], strides = [1, 1]} : vector<8x256xf32> to vector<8x128xf32>
    %16 = vector.extract_strided_slice %13 {offsets = [0, 0], sizes = [8, 128], strides = [1, 1]} : vector<8x256xf32> to vector<8x128xf32>
    %17 = arith.addf %15, %16 : vector<8x128xf32>
    %cst_12 = arith.constant 0.000000e+00 : f32
    %18 = vector.broadcast %cst_12 : f32 to vector<8x128xf32>
    %19 = arith.maximumf %17, %18 : vector<8x128xf32>
    %20 = arith.index_cast %10 : i32 to index
    %c0_13 = arith.constant 0 : index
    %21 = vector.load %arg13[%20, %c0_13] : memref<64x256xf32, #tpu.memory_space<vmem>>, vector<8x128xf32>
    tpu.vector_store %arg13[%20, %c0_13], %19 {strides = array<i32>} : memref<64x256xf32, #tpu.memory_space<vmem>>, vector<8x128xf32>,
    %22 = vector.extract_strided_slice %12 {offsets = [0, 128], sizes = [8, 128], strides = [1, 1]} : vector<8x256xf32> to vector<8x128xf32>
    %23 = vector.extract_strided_slice %13 {offsets = [0, 128], sizes = [8, 128], strides = [1, 1]} : vector<8x256xf32> to vector<8x128xf32>
    %24 = arith.addf %22, %23 : vector<8x128xf32>
    %25 = arith.negf %24 : vector<8x128xf32>
    %26 = math.exp %25 : vector<8x128xf32>
    %cst_14 = arith.constant 1.000000e+00 : f32
    %27 = vector.broadcast %cst_14 : f32 to vector<8x128xf32>
    %28 = arith.addf %27, %26 : vector<8x128xf32>
    %29 = arith.divf %27, %28 : vector<8x128xf32>
    %30 = math.tanh %24 : vector<8x128xf32>
    %31 = vector.extract_strided_slice %29 {offsets = [0, 0], sizes = [8, 32], strides = [1, 1]} : vector<8x128xf32> to vector<8x32xf32>
    %32 = vector.extract_strided_slice %29 {offsets = [0, 32], sizes = [8, 32], strides = [1, 1]} : vector<8x128xf32> to vector<8x32xf32>
    %33 = vector.extract_strided_slice %30 {offsets = [0, 64], sizes = [8, 32], strides = [1, 1]} : vector<8x128xf32> to vector<8x32xf32>
    %34 = vector.extract_strided_slice %29 {offsets = [0, 96], sizes = [8, 32], strides = [1, 1]} : vector<8x128xf32> to vector<8x32xf32>
    %35 = arith.mulf %32, %14 : vector<8x32xf32>
    %36 = arith.mulf %31, %33 : vector<8x32xf32>
    %37 = arith.addf %35, %36 : vector<8x32xf32>
    %38 = math.tanh %37 : vector<8x32xf32>
    %39 = arith.mulf %34, %38 : vector<8x32xf32>
    %40 = tpu.concatenate %37, %39 in 1 : vector<8x32xf32>, vector<8x32xf32> -> vector<8x64xf32>
    %c1_i32 = arith.constant 1 : i32
    %c8_i32_15 = arith.constant 8 : i32
    %41 = arith.muli %c1_i32, %c8_i32_15 : i32
    %42 = tpu.assume_multiple %41, 8 : i32
    %43 = arith.index_cast %42 : i32 to index
    %c0_16 = arith.constant 0 : index
    %44 = vector.load %arg13[%43, %c0_16] : memref<64x256xf32, #tpu.memory_space<vmem>>, vector<8x256xf32>
    %cst_17 = arith.constant dense<0.000000e+00> : vector<8x256xf32>
    %45 = tpu.matmul %40, %7, %cst_17 {dimension_numbers = #tpu.dot_dimension_numbers<[1], [0], [0], [1], [0, 0, 1, 1], [], []>} : vector<8x64xf32>, vector<64x256xf32>, vector<8x256xf32> -> vector<8x256xf32>
    %46 = vector.extract_strided_slice %40 {offsets = [0, 0], sizes = [8, 32], strides = [1, 1]} : vector<8x64xf32> to vector<8x32xf32>
    %47 = vector.extract_strided_slice %44 {offsets = [0, 0], sizes = [8, 128], strides = [1, 1]} : vector<8x256xf32> to vector<8x128xf32>
    %48 = vector.extract_strided_slice %45 {offsets = [0, 0], sizes = [8, 128], strides = [1, 1]} : vector<8x256xf32> to vector<8x128xf32>
    %49 = arith.addf %47, %48 : vector<8x128xf32>
    %cst_18 = arith.constant 0.000000e+00 : f32
    %50 = vector.broadcast %cst_18 : f32 to vector<8x128xf32>
    %51 = arith.maximumf %49, %50 : vector<8x128xf32>
    %52 = arith.index_cast %42 : i32 to index
    %c0_19 = arith.constant 0 : index
    %53 = vector.load %arg13[%52, %c0_19] : memref<64x256xf32, #tpu.memory_space<vmem>>, vector<8x128xf32>
    tpu.vector_store %arg13[%52, %c0_19], %51 {strides = array<i32>} : memref<64x256xf32, #tpu.memory_space<vmem>>, vector<8x128xf32>,
    %54 = vector.extract_strided_slice %44 {offsets = [0, 128], sizes = [8, 128], strides = [1, 1]} : vector<8x256xf32> to vector<8x128xf32>
    %55 = vector.extract_strided_slice %45 {offsets = [0, 128], sizes = [8, 128], strides = [1, 1]} : vector<8x256xf32> to vector<8x128xf32>
    %56 = arith.addf %54, %55 : vector<8x128xf32>
    %57 = arith.negf %56 : vector<8x128xf32>
    %58 = math.exp %57 : vector<8x128xf32>
    %cst_20 = arith.constant 1.000000e+00 : f32
    %59 = vector.broadcast %cst_20 : f32 to vector<8x128xf32>
    %60 = arith.addf %59, %58 : vector<8x128xf32>
    %61 = arith.divf %59, %60 : vector<8x128xf32>
    %62 = math.tanh %56 : vector<8x128xf32>
    %63 = vector.extract_strided_slice %61 {offsets = [0, 0], sizes = [8, 32], strides = [1, 1]} : vector<8x128xf32> to vector<8x32xf32>
    %64 = vector.extract_strided_slice %61 {offsets = [0, 32], sizes = [8, 32], strides = [1, 1]} : vector<8x128xf32> to vector<8x32xf32>
    %65 = vector.extract_strided_slice %62 {offsets = [0, 64], sizes = [8, 32], strides = [1, 1]} : vector<8x128xf32> to vector<8x32xf32>
    %66 = vector.extract_strided_slice %61 {offsets = [0, 96], sizes = [8, 32], strides = [1, 1]} : vector<8x128xf32> to vector<8x32xf32>
    %67 = arith.mulf %64, %46 : vector<8x32xf32>
    %68 = arith.mulf %63, %65 : vector<8x32xf32>
    %69 = arith.addf %67, %68 : vector<8x32xf32>
    %70 = math.tanh %69 : vector<8x32xf32>
    %71 = arith.mulf %66, %70 : vector<8x32xf32>
    %72 = tpu.concatenate %69, %71 in 1 : vector<8x32xf32>, vector<8x32xf32> -> vector<8x64xf32>
    %c2_i32 = arith.constant 2 : i32
    %c8_i32_21 = arith.constant 8 : i32
    %73 = arith.muli %c2_i32, %c8_i32_21 : i32
    %74 = tpu.assume_multiple %73, 8 : i32
    %75 = arith.index_cast %74 : i32 to index
    %c0_22 = arith.constant 0 : index
    %76 = vector.load %arg13[%75, %c0_22] : memref<64x256xf32, #tpu.memory_space<vmem>>, vector<8x256xf32>
    %cst_23 = arith.constant dense<0.000000e+00> : vector<8x256xf32>
    %77 = tpu.matmul %72, %7, %cst_23 {dimension_numbers = #tpu.dot_dimension_numbers<[1], [0], [0], [1], [0, 0, 1, 1], [], []>} : vector<8x64xf32>, vector<64x256xf32>, vector<8x256xf32> -> vector<8x256xf32>
    %78 = vector.extract_strided_slice %72 {offsets = [0, 0], sizes = [8, 32], strides = [1, 1]} : vector<8x64xf32> to vector<8x32xf32>
    %79 = vector.extract_strided_slice %76 {offsets = [0, 0], sizes = [8, 128], strides = [1, 1]} : vector<8x256xf32> to vector<8x128xf32>
    %80 = vector.extract_strided_slice %77 {offsets = [0, 0], sizes = [8, 128], strides = [1, 1]} : vector<8x256xf32> to vector<8x128xf32>
    %81 = arith.addf %79, %80 : vector<8x128xf32>
    %cst_24 = arith.constant 0.000000e+00 : f32
    %82 = vector.broadcast %cst_24 : f32 to vector<8x128xf32>
    %83 = arith.maximumf %81, %82 : vector<8x128xf32>
    %84 = arith.index_cast %74 : i32 to index
    %c0_25 = arith.constant 0 : index
    %85 = vector.load %arg13[%84, %c0_25] : memref<64x256xf32, #tpu.memory_space<vmem>>, vector<8x128xf32>
    tpu.vector_store %arg13[%84, %c0_25], %83 {strides = array<i32>} : memref<64x256xf32, #tpu.memory_space<vmem>>, vector<8x128xf32>,
    %86 = vector.extract_strided_slice %76 {offsets = [0, 128], sizes = [8, 128], strides = [1, 1]} : vector<8x256xf32> to vector<8x128xf32>
    %87 = vector.extract_strided_slice %77 {offsets = [0, 128], sizes = [8, 128], strides = [1, 1]} : vector<8x256xf32> to vector<8x128xf32>
    %88 = arith.addf %86, %87 : vector<8x128xf32>
    %89 = arith.negf %88 : vector<8x128xf32>
    %90 = math.exp %89 : vector<8x128xf32>
    %cst_26 = arith.constant 1.000000e+00 : f32
    %91 = vector.broadcast %cst_26 : f32 to vector<8x128xf32>
    %92 = arith.addf %91, %90 : vector<8x128xf32>
    %93 = arith.divf %91, %92 : vector<8x128xf32>
    %94 = math.tanh %88 : vector<8x128xf32>
    %95 = vector.extract_strided_slice %93 {offsets = [0, 0], sizes = [8, 32], strides = [1, 1]} : vector<8x128xf32> to vector<8x32xf32>
    %96 = vector.extract_strided_slice %93 {offsets = [0, 32], sizes = [8, 32], strides = [1, 1]} : vector<8x128xf32> to vector<8x32xf32>
    %97 = vector.extract_strided_slice %94 {offsets = [0, 64], sizes = [8, 32], strides = [1, 1]} : vector<8x128xf32> to vector<8x32xf32>
    %98 = vector.extract_strided_slice %93 {offsets = [0, 96], sizes = [8, 32], strides = [1, 1]} : vector<8x128xf32> to vector<8x32xf32>
    %99 = arith.mulf %96, %78 : vector<8x32xf32>
    %100 = arith.mulf %95, %97 : vector<8x32xf32>
    %101 = arith.addf %99, %100 : vector<8x32xf32>
    %102 = math.tanh %101 : vector<8x32xf32>
    %103 = arith.mulf %98, %102 : vector<8x32xf32>
    %104 = tpu.concatenate %101, %103 in 1 : vector<8x32xf32>, vector<8x32xf32> -> vector<8x64xf32>
    %c3_i32 = arith.constant 3 : i32
    %c8_i32_27 = arith.constant 8 : i32
    %105 = arith.muli %c3_i32, %c8_i32_27 : i32
    %106 = tpu.assume_multiple %105, 8 : i32
    %107 = arith.index_cast %106 : i32 to index
    %c0_28 = arith.constant 0 : index
    %108 = vector.load %arg13[%107, %c0_28] : memref<64x256xf32, #tpu.memory_space<vmem>>, vector<8x256xf32>
    %cst_29 = arith.constant dense<0.000000e+00> : vector<8x256xf32>
    %109 = tpu.matmul %104, %7, %cst_29 {dimension_numbers = #tpu.dot_dimension_numbers<[1], [0], [0], [1], [0, 0, 1, 1], [], []>} : vector<8x64xf32>, vector<64x256xf32>, vector<8x256xf32> -> vector<8x256xf32>
    %110 = vector.extract_strided_slice %104 {offsets = [0, 0], sizes = [8, 32], strides = [1, 1]} : vector<8x64xf32> to vector<8x32xf32>
    %111 = vector.extract_strided_slice %108 {offsets = [0, 0], sizes = [8, 128], strides = [1, 1]} : vector<8x256xf32> to vector<8x128xf32>
    %112 = vector.extract_strided_slice %109 {offsets = [0, 0], sizes = [8, 128], strides = [1, 1]} : vector<8x256xf32> to vector<8x128xf32>
    %113 = arith.addf %111, %112 : vector<8x128xf32>
    %cst_30 = arith.constant 0.000000e+00 : f32
    %114 = vector.broadcast %cst_30 : f32 to vector<8x128xf32>
    %115 = arith.maximumf %113, %114 : vector<8x128xf32>
    %116 = arith.index_cast %106 : i32 to index
    %c0_31 = arith.constant 0 : index
    %117 = vector.load %arg13[%116, %c0_31] : memref<64x256xf32, #tpu.memory_space<vmem>>, vector<8x128xf32>
    tpu.vector_store %arg13[%116, %c0_31], %115 {strides = array<i32>} : memref<64x256xf32, #tpu.memory_space<vmem>>, vector<8x128xf32>,
    %118 = vector.extract_strided_slice %108 {offsets = [0, 128], sizes = [8, 128], strides = [1, 1]} : vector<8x256xf32> to vector<8x128xf32>
    %119 = vector.extract_strided_slice %109 {offsets = [0, 128], sizes = [8, 128], strides = [1, 1]} : vector<8x256xf32> to vector<8x128xf32>
    %120 = arith.addf %118, %119 : vector<8x128xf32>
    %121 = arith.negf %120 : vector<8x128xf32>
    %122 = math.exp %121 : vector<8x128xf32>
    %cst_32 = arith.constant 1.000000e+00 : f32
    %123 = vector.broadcast %cst_32 : f32 to vector<8x128xf32>
    %124 = arith.addf %123, %122 : vector<8x128xf32>
    %125 = arith.divf %123, %124 : vector<8x128xf32>
    %126 = math.tanh %120 : vector<8x128xf32>
    %127 = vector.extract_strided_slice %125 {offsets = [0, 0], sizes = [8, 32], strides = [1, 1]} : vector<8x128xf32> to vector<8x32xf32>
    %128 = vector.extract_strided_slice %125 {offsets = [0, 32], sizes = [8, 32], strides = [1, 1]} : vector<8x128xf32> to vector<8x32xf32>
    %129 = vector.extract_strided_slice %126 {offsets = [0, 64], sizes = [8, 32], strides = [1, 1]} : vector<8x128xf32> to vector<8x32xf32>
    %130 = vector.extract_strided_slice %125 {offsets = [0, 96], sizes = [8, 32], strides = [1, 1]} : vector<8x128xf32> to vector<8x32xf32>
    %131 = arith.mulf %128, %110 : vector<8x32xf32>
    %132 = arith.mulf %127, %129 : vector<8x32xf32>
    %133 = arith.addf %131, %132 : vector<8x32xf32>
    %134 = math.tanh %133 : vector<8x32xf32>
    %135 = arith.mulf %130, %134 : vector<8x32xf32>
    %136 = tpu.concatenate %133, %135 in 1 : vector<8x32xf32>, vector<8x32xf32> -> vector<8x64xf32>
    %c4_i32 = arith.constant 4 : i32
    %c8_i32_33 = arith.constant 8 : i32
    %137 = arith.muli %c4_i32, %c8_i32_33 : i32
    %138 = tpu.assume_multiple %137, 8 : i32
    %139 = arith.index_cast %138 : i32 to index
    %c0_34 = arith.constant 0 : index
    %140 = vector.load %arg13[%139, %c0_34] : memref<64x256xf32, #tpu.memory_space<vmem>>, vector<8x256xf32>
    %cst_35 = arith.constant dense<0.000000e+00> : vector<8x256xf32>
    %141 = tpu.matmul %136, %7, %cst_35 {dimension_numbers = #tpu.dot_dimension_numbers<[1], [0], [0], [1], [0, 0, 1, 1], [], []>} : vector<8x64xf32>, vector<64x256xf32>, vector<8x256xf32> -> vector<8x256xf32>
    %142 = vector.extract_strided_slice %136 {offsets = [0, 0], sizes = [8, 32], strides = [1, 1]} : vector<8x64xf32> to vector<8x32xf32>
    %143 = vector.extract_strided_slice %140 {offsets = [0, 0], sizes = [8, 128], strides = [1, 1]} : vector<8x256xf32> to vector<8x128xf32>
    %144 = vector.extract_strided_slice %141 {offsets = [0, 0], sizes = [8, 128], strides = [1, 1]} : vector<8x256xf32> to vector<8x128xf32>
    %145 = arith.addf %143, %144 : vector<8x128xf32>
    %cst_36 = arith.constant 0.000000e+00 : f32
    %146 = vector.broadcast %cst_36 : f32 to vector<8x128xf32>
    %147 = arith.maximumf %145, %146 : vector<8x128xf32>
    %148 = arith.index_cast %138 : i32 to index
    %c0_37 = arith.constant 0 : index
    %149 = vector.load %arg13[%148, %c0_37] : memref<64x256xf32, #tpu.memory_space<vmem>>, vector<8x128xf32>
    tpu.vector_store %arg13[%148, %c0_37], %147 {strides = array<i32>} : memref<64x256xf32, #tpu.memory_space<vmem>>, vector<8x128xf32>,
    %150 = vector.extract_strided_slice %140 {offsets = [0, 128], sizes = [8, 128], strides = [1, 1]} : vector<8x256xf32> to vector<8x128xf32>
    %151 = vector.extract_strided_slice %141 {offsets = [0, 128], sizes = [8, 128], strides = [1, 1]} : vector<8x256xf32> to vector<8x128xf32>
    %152 = arith.addf %150, %151 : vector<8x128xf32>
    %153 = arith.negf %152 : vector<8x128xf32>
    %154 = math.exp %153 : vector<8x128xf32>
    %cst_38 = arith.constant 1.000000e+00 : f32
    %155 = vector.broadcast %cst_38 : f32 to vector<8x128xf32>
    %156 = arith.addf %155, %154 : vector<8x128xf32>
    %157 = arith.divf %155, %156 : vector<8x128xf32>
    %158 = math.tanh %152 : vector<8x128xf32>
    %159 = vector.extract_strided_slice %157 {offsets = [0, 0], sizes = [8, 32], strides = [1, 1]} : vector<8x128xf32> to vector<8x32xf32>
    %160 = vector.extract_strided_slice %157 {offsets = [0, 32], sizes = [8, 32], strides = [1, 1]} : vector<8x128xf32> to vector<8x32xf32>
    %161 = vector.extract_strided_slice %158 {offsets = [0, 64], sizes = [8, 32], strides = [1, 1]} : vector<8x128xf32> to vector<8x32xf32>
    %162 = vector.extract_strided_slice %157 {offsets = [0, 96], sizes = [8, 32], strides = [1, 1]} : vector<8x128xf32> to vector<8x32xf32>
    %163 = arith.mulf %160, %142 : vector<8x32xf32>
    %164 = arith.mulf %159, %161 : vector<8x32xf32>
    %165 = arith.addf %163, %164 : vector<8x32xf32>
    %166 = math.tanh %165 : vector<8x32xf32>
    %167 = arith.mulf %162, %166 : vector<8x32xf32>
    %168 = tpu.concatenate %165, %167 in 1 : vector<8x32xf32>, vector<8x32xf32> -> vector<8x64xf32>
    %c5_i32 = arith.constant 5 : i32
    %c8_i32_39 = arith.constant 8 : i32
    %169 = arith.muli %c5_i32, %c8_i32_39 : i32
    %170 = tpu.assume_multiple %169, 8 : i32
    %171 = arith.index_cast %170 : i32 to index
    %c0_40 = arith.constant 0 : index
    %172 = vector.load %arg13[%171, %c0_40] : memref<64x256xf32, #tpu.memory_space<vmem>>, vector<8x256xf32>
    %cst_41 = arith.constant dense<0.000000e+00> : vector<8x256xf32>
    %173 = tpu.matmul %168, %7, %cst_41 {dimension_numbers = #tpu.dot_dimension_numbers<[1], [0], [0], [1], [0, 0, 1, 1], [], []>} : vector<8x64xf32>, vector<64x256xf32>, vector<8x256xf32> -> vector<8x256xf32>
    %174 = vector.extract_strided_slice %168 {offsets = [0, 0], sizes = [8, 32], strides = [1, 1]} : vector<8x64xf32> to vector<8x32xf32>
    %175 = vector.extract_strided_slice %172 {offsets = [0, 0], sizes = [8, 128], strides = [1, 1]} : vector<8x256xf32> to vector<8x128xf32>
    %176 = vector.extract_strided_slice %173 {offsets = [0, 0], sizes = [8, 128], strides = [1, 1]} : vector<8x256xf32> to vector<8x128xf32>
    %177 = arith.addf %175, %176 : vector<8x128xf32>
    %cst_42 = arith.constant 0.000000e+00 : f32
    %178 = vector.broadcast %cst_42 : f32 to vector<8x128xf32>
    %179 = arith.maximumf %177, %178 : vector<8x128xf32>
    %180 = arith.index_cast %170 : i32 to index
    %c0_43 = arith.constant 0 : index
    %181 = vector.load %arg13[%180, %c0_43] : memref<64x256xf32, #tpu.memory_space<vmem>>, vector<8x128xf32>
    tpu.vector_store %arg13[%180, %c0_43], %179 {strides = array<i32>} : memref<64x256xf32, #tpu.memory_space<vmem>>, vector<8x128xf32>,
    %182 = vector.extract_strided_slice %172 {offsets = [0, 128], sizes = [8, 128], strides = [1, 1]} : vector<8x256xf32> to vector<8x128xf32>
    %183 = vector.extract_strided_slice %173 {offsets = [0, 128], sizes = [8, 128], strides = [1, 1]} : vector<8x256xf32> to vector<8x128xf32>
    %184 = arith.addf %182, %183 : vector<8x128xf32>
    %185 = arith.negf %184 : vector<8x128xf32>
    %186 = math.exp %185 : vector<8x128xf32>
    %cst_44 = arith.constant 1.000000e+00 : f32
    %187 = vector.broadcast %cst_44 : f32 to vector<8x128xf32>
    %188 = arith.addf %187, %186 : vector<8x128xf32>
    %189 = arith.divf %187, %188 : vector<8x128xf32>
    %190 = math.tanh %184 : vector<8x128xf32>
    %191 = vector.extract_strided_slice %189 {offsets = [0, 0], sizes = [8, 32], strides = [1, 1]} : vector<8x128xf32> to vector<8x32xf32>
    %192 = vector.extract_strided_slice %189 {offsets = [0, 32], sizes = [8, 32], strides = [1, 1]} : vector<8x128xf32> to vector<8x32xf32>
    %193 = vector.extract_strided_slice %190 {offsets = [0, 64], sizes = [8, 32], strides = [1, 1]} : vector<8x128xf32> to vector<8x32xf32>
    %194 = vector.extract_strided_slice %189 {offsets = [0, 96], sizes = [8, 32], strides = [1, 1]} : vector<8x128xf32> to vector<8x32xf32>
    %195 = arith.mulf %192, %174 : vector<8x32xf32>
    %196 = arith.mulf %191, %193 : vector<8x32xf32>
    %197 = arith.addf %195, %196 : vector<8x32xf32>
    %198 = math.tanh %197 : vector<8x32xf32>
    %199 = arith.mulf %194, %198 : vector<8x32xf32>
    %200 = tpu.concatenate %197, %199 in 1 : vector<8x32xf32>, vector<8x32xf32> -> vector<8x64xf32>
    %c6_i32 = arith.constant 6 : i32
    %c8_i32_45 = arith.constant 8 : i32
    %201 = arith.muli %c6_i32, %c8_i32_45 : i32
    %202 = tpu.assume_multiple %201, 8 : i32
    %203 = arith.index_cast %202 : i32 to index
    %c0_46 = arith.constant 0 : index
    %204 = vector.load %arg13[%203, %c0_46] : memref<64x256xf32, #tpu.memory_space<vmem>>, vector<8x256xf32>
    %cst_47 = arith.constant dense<0.000000e+00> : vector<8x256xf32>
    %205 = tpu.matmul %200, %7, %cst_47 {dimension_numbers = #tpu.dot_dimension_numbers<[1], [0], [0], [1], [0, 0, 1, 1], [], []>} : vector<8x64xf32>, vector<64x256xf32>, vector<8x256xf32> -> vector<8x256xf32>
    %206 = vector.extract_strided_slice %200 {offsets = [0, 0], sizes = [8, 32], strides = [1, 1]} : vector<8x64xf32> to vector<8x32xf32>
    %207 = vector.extract_strided_slice %204 {offsets = [0, 0], sizes = [8, 128], strides = [1, 1]} : vector<8x256xf32> to vector<8x128xf32>
    %208 = vector.extract_strided_slice %205 {offsets = [0, 0], sizes = [8, 128], strides = [1, 1]} : vector<8x256xf32> to vector<8x128xf32>
    %209 = arith.addf %207, %208 : vector<8x128xf32>
    %cst_48 = arith.constant 0.000000e+00 : f32
    %210 = vector.broadcast %cst_48 : f32 to vector<8x128xf32>
    %211 = arith.maximumf %209, %210 : vector<8x128xf32>
    %212 = arith.index_cast %202 : i32 to index
    %c0_49 = arith.constant 0 : index
    %213 = vector.load %arg13[%212, %c0_49] : memref<64x256xf32, #tpu.memory_space<vmem>>, vector<8x128xf32>
    tpu.vector_store %arg13[%212, %c0_49], %211 {strides = array<i32>} : memref<64x256xf32, #tpu.memory_space<vmem>>, vector<8x128xf32>,
    %214 = vector.extract_strided_slice %204 {offsets = [0, 128], sizes = [8, 128], strides = [1, 1]} : vector<8x256xf32> to vector<8x128xf32>
    %215 = vector.extract_strided_slice %205 {offsets = [0, 128], sizes = [8, 128], strides = [1, 1]} : vector<8x256xf32> to vector<8x128xf32>
    %216 = arith.addf %214, %215 : vector<8x128xf32>
    %217 = arith.negf %216 : vector<8x128xf32>
    %218 = math.exp %217 : vector<8x128xf32>
    %cst_50 = arith.constant 1.000000e+00 : f32
    %219 = vector.broadcast %cst_50 : f32 to vector<8x128xf32>
    %220 = arith.addf %219, %218 : vector<8x128xf32>
    %221 = arith.divf %219, %220 : vector<8x128xf32>
    %222 = math.tanh %216 : vector<8x128xf32>
    %223 = vector.extract_strided_slice %221 {offsets = [0, 0], sizes = [8, 32], strides = [1, 1]} : vector<8x128xf32> to vector<8x32xf32>
    %224 = vector.extract_strided_slice %221 {offsets = [0, 32], sizes = [8, 32], strides = [1, 1]} : vector<8x128xf32> to vector<8x32xf32>
    %225 = vector.extract_strided_slice %222 {offsets = [0, 64], sizes = [8, 32], strides = [1, 1]} : vector<8x128xf32> to vector<8x32xf32>
    %226 = vector.extract_strided_slice %221 {offsets = [0, 96], sizes = [8, 32], strides = [1, 1]} : vector<8x128xf32> to vector<8x32xf32>
    %227 = arith.mulf %224, %206 : vector<8x32xf32>
    %228 = arith.mulf %223, %225 : vector<8x32xf32>
    %229 = arith.addf %227, %228 : vector<8x32xf32>
    %230 = math.tanh %229 : vector<8x32xf32>
    %231 = arith.mulf %226, %230 : vector<8x32xf32>
    %232 = tpu.concatenate %229, %231 in 1 : vector<8x32xf32>, vector<8x32xf32> -> vector<8x64xf32>
    %c7_i32 = arith.constant 7 : i32
    %c8_i32_51 = arith.constant 8 : i32
    %233 = arith.muli %c7_i32, %c8_i32_51 : i32
    %234 = tpu.assume_multiple %233, 8 : i32
    %235 = arith.index_cast %234 : i32 to index
    %c0_52 = arith.constant 0 : index
    %236 = vector.load %arg13[%235, %c0_52] : memref<64x256xf32, #tpu.memory_space<vmem>>, vector<8x256xf32>
    %cst_53 = arith.constant dense<0.000000e+00> : vector<8x256xf32>
    %237 = tpu.matmul %232, %7, %cst_53 {dimension_numbers = #tpu.dot_dimension_numbers<[1], [0], [0], [1], [0, 0, 1, 1], [], []>} : vector<8x64xf32>, vector<64x256xf32>, vector<8x256xf32> -> vector<8x256xf32>
    %238 = vector.extract_strided_slice %232 {offsets = [0, 0], sizes = [8, 32], strides = [1, 1]} : vector<8x64xf32> to vector<8x32xf32>
    %239 = vector.extract_strided_slice %236 {offsets = [0, 0], sizes = [8, 128], strides = [1, 1]} : vector<8x256xf32> to vector<8x128xf32>
    %240 = vector.extract_strided_slice %237 {offsets = [0, 0], sizes = [8, 128], strides = [1, 1]} : vector<8x256xf32> to vector<8x128xf32>
    %241 = arith.addf %239, %240 : vector<8x128xf32>
    %cst_54 = arith.constant 0.000000e+00 : f32
    %242 = vector.broadcast %cst_54 : f32 to vector<8x128xf32>
    %243 = arith.maximumf %241, %242 : vector<8x128xf32>
    %244 = arith.index_cast %234 : i32 to index
    %c0_55 = arith.constant 0 : index
    %245 = vector.load %arg13[%244, %c0_55] : memref<64x256xf32, #tpu.memory_space<vmem>>, vector<8x128xf32>
    tpu.vector_store %arg13[%244, %c0_55], %243 {strides = array<i32>} : memref<64x256xf32, #tpu.memory_space<vmem>>, vector<8x128xf32>,
    %246 = vector.extract_strided_slice %236 {offsets = [0, 128], sizes = [8, 128], strides = [1, 1]} : vector<8x256xf32> to vector<8x128xf32>
    %247 = vector.extract_strided_slice %237 {offsets = [0, 128], sizes = [8, 128], strides = [1, 1]} : vector<8x256xf32> to vector<8x128xf32>
    %248 = arith.addf %246, %247 : vector<8x128xf32>
    %249 = arith.negf %248 : vector<8x128xf32>
    %250 = math.exp %249 : vector<8x128xf32>
    %cst_56 = arith.constant 1.000000e+00 : f32
    %251 = vector.broadcast %cst_56 : f32 to vector<8x128xf32>
    %252 = arith.addf %251, %250 : vector<8x128xf32>
    %253 = arith.divf %251, %252 : vector<8x128xf32>
    %254 = math.tanh %248 : vector<8x128xf32>
    %255 = vector.extract_strided_slice %253 {offsets = [0, 0], sizes = [8, 32], strides = [1, 1]} : vector<8x128xf32> to vector<8x32xf32>
    %256 = vector.extract_strided_slice %253 {offsets = [0, 32], sizes = [8, 32], strides = [1, 1]} : vector<8x128xf32> to vector<8x32xf32>
    %257 = vector.extract_strided_slice %254 {offsets = [0, 64], sizes = [8, 32], strides = [1, 1]} : vector<8x128xf32> to vector<8x32xf32>
    %258 = vector.extract_strided_slice %253 {offsets = [0, 96], sizes = [8, 32], strides = [1, 1]} : vector<8x128xf32> to vector<8x32xf32>
    %259 = arith.mulf %256, %238 : vector<8x32xf32>
    %260 = arith.mulf %255, %257 : vector<8x32xf32>
    %261 = arith.addf %259, %260 : vector<8x32xf32>
    %262 = math.tanh %261 : vector<8x32xf32>
    %263 = arith.mulf %258, %262 : vector<8x32xf32>
    %264 = tpu.concatenate %261, %263 in 1 : vector<8x32xf32>, vector<8x32xf32> -> vector<8x64xf32>
    %c8_i32_57 = arith.constant 8 : i32
    %265 = vector.extract_strided_slice %264 {offsets = [0, 32], sizes = [8, 32], strides = [1, 1]} : vector<8x64xf32> to vector<8x32xf32>
    %c0_58 = arith.constant 0 : index
    %c0_59 = arith.constant 0 : index
    %266 = vector.load %arg13[%c0_58, %c0_59] : memref<64x256xf32, #tpu.memory_space<vmem>>, vector<64x128xf32>
    %c0_60 = arith.constant 0 : index
    %c0_61 = arith.constant 0 : index
    %267 = vector.load %arg4[%c0_60, %c0_61] : memref<128x2xf32, #tpu.memory_space<vmem>>, vector<128x2xf32>
    %cst_62 = arith.constant dense<0.000000e+00> : vector<64x2xf32>
    %268 = tpu.matmul %266, %267, %cst_62 {dimension_numbers = #tpu.dot_dimension_numbers<[1], [0], [0], [1], [0, 0, 1, 1], [], []>} : vector<64x128xf32>, vector<128x2xf32>, vector<64x2xf32> -> vector<64x2xf32>
    %c0_63 = arith.constant 0 : index
    %c0_64 = arith.constant 0 : index
    %269 = vector.load %arg5[%c0_63, %c0_64] : memref<1x2xf32, #tpu.memory_space<vmem>>, vector<1x2xf32>
    %270 = vector.broadcast %269 : vector<1x2xf32> to vector<64x2xf32>
    %271 = arith.addf %268, %270 : vector<64x2xf32>
    %cst_65 = arith.constant dense<0xFF800000> : vector<64xf32>
    %272 = vector.multi_reduction <maximumf>, %271, %cst_65 [1] : vector<64x2xf32> to vector<64xf32>
    %273 = vector.shape_cast %272 : vector<64xf32> to vector<64x1xf32>
    %274 = vector.broadcast %273 : vector<64x1xf32> to vector<64x2xf32>
    %275 = arith.subf %271, %274 : vector<64x2xf32>
    %276 = math.exp %275 : vector<64x2xf32>
    %cst_66 = arith.constant dense<0.000000e+00> : vector<64xf32>
    %277 = vector.multi_reduction <add>, %276, %cst_66 [1] : vector<64x2xf32> to vector<64xf32>
    %278 = vector.shape_cast %277 : vector<64xf32> to vector<64x1xf32>
    %279 = math.log %278 : vector<64x1xf32>
    %280 = arith.addf %273, %279 : vector<64x1xf32>
    %cst_67 = arith.constant dense<0.000000e+00> : vector<64xf32>
    %281 = vector.multi_reduction <add>, %271, %cst_67 [1] : vector<64x2xf32> to vector<64xf32>
    %282 = vector.shape_cast %281 : vector<64xf32> to vector<64x1xf32>
    %cst_68 = arith.constant 5.000000e-01 : f32
    %283 = vector.broadcast %cst_68 : f32 to vector<64x1xf32>
    %284 = arith.mulf %283, %282 : vector<64x1xf32>
    %285 = arith.subf %280, %284 : vector<64x1xf32>
    %c0_69 = arith.constant 0 : index
    %c0_70 = arith.constant 0 : index
    %286 = vector.load %arg10[%c0_69, %c0_70] : memref<64x1xf32, #tpu.memory_space<vmem>>, vector<64x1xf32>
    %287 = arith.mulf %285, %286 : vector<64x1xf32>
    %288 = vector.shape_cast %287 : vector<64x1xf32> to vector<1x64x1xf32>
    %cst_71 = arith.constant dense<0.000000e+00> : vector<1xf32>
    %289 = vector.multi_reduction <add>, %288, %cst_71 [1, 2] : vector<1x64x1xf32> to vector<1xf32>
    %290 = vector.shape_cast %289 : vector<1xf32> to vector<1x1x1xf32>
    %291 = vector.extract %290[0, 0, 0] : f32 from vector<1x1x1xf32>
    %292 = vector.broadcast %291 : f32 to vector<1x1xf32>
    %cst_72 = arith.constant 2.500000e-01 : f32
    %293 = vector.broadcast %cst_72 : f32 to vector<1x1xf32>
    %294 = arith.mulf %292, %293 : vector<1x1xf32>
    %c0_73 = arith.constant 0 : index
    %c0_74 = arith.constant 0 : index
    %295 = vector.load %arg12[%c0_73, %c0_74] : memref<1x1xf32, #tpu.memory_space<vmem>>, vector<1x1xf32>
    tpu.vector_store %arg12[%c0_73, %c0_74], %294 {strides = array<i32>} : memref<1x1xf32, #tpu.memory_space<vmem>>, vector<1x1xf32>,
    %c0_75 = arith.constant 0 : index
    %c0_76 = arith.constant 0 : index
    %296 = vector.load %arg6[%c0_75, %c0_76] : memref<32x32xf32, #tpu.memory_space<vmem>>, vector<32x32xf32>
    %cst_77 = arith.constant dense<0.000000e+00> : vector<8x32xf32>
    %297 = tpu.matmul %265, %296, %cst_77 {dimension_numbers = #tpu.dot_dimension_numbers<[1], [0], [0], [1], [0, 0, 1, 1], [], []>} : vector<8x32xf32>, vector<32x32xf32>, vector<8x32xf32> -> vector<8x32xf32>
    %c0_78 = arith.constant 0 : index
    %c0_79 = arith.constant 0 : index
    %298 = vector.load %arg7[%c0_78, %c0_79] : memref<1x32xf32, #tpu.memory_space<vmem>>, vector<1x32xf32>
    %299 = vector.broadcast %298 : vector<1x32xf32> to vector<8x32xf32>
    %300 = arith.addf %297, %299 : vector<8x32xf32>
    %cst_80 = arith.constant 0.000000e+00 : f32
    %301 = vector.broadcast %cst_80 : f32 to vector<8x32xf32>
    %302 = arith.maximumf %300, %301 : vector<8x32xf32>
    %c0_81 = arith.constant 0 : index
    %c0_82 = arith.constant 0 : index
    %303 = vector.load %arg8[%c0_81, %c0_82] : memref<32x2xf32, #tpu.memory_space<vmem>>, vector<32x2xf32>
    %cst_83 = arith.constant dense<0.000000e+00> : vector<8x2xf32>
    %304 = tpu.matmul %302, %303, %cst_83 {dimension_numbers = #tpu.dot_dimension_numbers<[1], [0], [0], [1], [0, 0, 1, 1], [], []>} : vector<8x32xf32>, vector<32x2xf32>, vector<8x2xf32> -> vector<8x2xf32>
    %c0_84 = arith.constant 0 : index
    %c0_85 = arith.constant 0 : index
    %305 = vector.load %arg9[%c0_84, %c0_85] : memref<1x2xf32, #tpu.memory_space<vmem>>, vector<1x2xf32>
    %306 = vector.broadcast %305 : vector<1x2xf32> to vector<8x2xf32>
    %307 = arith.addf %304, %306 : vector<8x2xf32>
    %cst_86 = arith.constant dense<0xFF800000> : vector<8xf32>
    %308 = vector.multi_reduction <maximumf>, %307, %cst_86 [1] : vector<8x2xf32> to vector<8xf32>
    %309 = vector.shape_cast %308 : vector<8xf32> to vector<8x1xf32>
    %310 = vector.broadcast %309 : vector<8x1xf32> to vector<8x2xf32>
    %311 = arith.subf %307, %310 : vector<8x2xf32>
    %312 = math.exp %311 : vector<8x2xf32>
    %cst_87 = arith.constant dense<0.000000e+00> : vector<8xf32>
    %313 = vector.multi_reduction <add>, %312, %cst_87 [1] : vector<8x2xf32> to vector<8xf32>
    %314 = vector.shape_cast %313 : vector<8xf32> to vector<8x1xf32>
    %315 = vector.broadcast %314 : vector<8x1xf32> to vector<8x2xf32>
    %316 = arith.divf %312, %315 : vector<8x2xf32>
    %c0_88 = arith.constant 0 : index
    %c0_89 = arith.constant 0 : index
    %317 = vector.load %arg11[%c0_88, %c0_89] : memref<8x2xf32, #tpu.memory_space<vmem>>, vector<8x2xf32>
    tpu.vector_store %arg11[%c0_88, %c0_89], %316 {strides = array<i32>} : memref<8x2xf32, #tpu.memory_space<vmem>>, vector<8x2xf32>,
    return
  }
}

</mosaic_0001>

<llo_original>
// kernel: model3_supervised_pallas.1
$region0: #{model3_supervised_pallas.1}
  #allocation0 [shape = 'u32[]', space=smem, size = 0x4, offset = 0x4, fixed_abs, tag = 'smem constant byte address 0x4 - core index']
  #allocation1 [shape = 'u32[144,128]{1,0:T(1,128)}', space=vmem, size = 0x12000, scoped, tag = 'internal scratch']
  #allocation2 [shape = 'f32[64,256]{1,0:T(8,128)}', space=vmem, size = 0x10000, scoped, tag = 'scratch operand']
  %s0 = inlined_call_operand.vmem [shape: f32[64,32], index: 0, kind: input, shape index: {}]
  %s1 = inlined_call_operand.vmem [shape: f32[32,256], index: 1, kind: input, shape index: {}]
  %s2 = inlined_call_operand.vmem [shape: f32[64,256], index: 2, kind: input, shape index: {}]
  %s3 = inlined_call_operand.vmem [shape: f32[1,256], index: 3, kind: input, shape index: {}]
  %s4 = inlined_call_operand.vmem [shape: f32[128,2], index: 4, kind: input, shape index: {}]
  %s5 = inlined_call_operand.vmem [shape: f32[1,2], index: 5, kind: input, shape index: {}]
  %s6 = inlined_call_operand.vmem [shape: f32[32,32], index: 6, kind: input, shape index: {}]
  %s7 = inlined_call_operand.vmem [shape: f32[1,32], index: 7, kind: input, shape index: {}]
  %s8 = inlined_call_operand.vmem [shape: f32[32,2], index: 8, kind: input, shape index: {}]
  %s9 = inlined_call_operand.vmem [shape: f32[1,2], index: 9, kind: input, shape index: {}]
  %s10 = inlined_call_operand.vmem [shape: f32[64,1], index: 10, kind: input, shape index: {}]
  %s11 = inlined_call_operand.vmem [shape: f32[8,2], index: 11, kind: output, shape index: {0}]
  %s12 = inlined_call_operand.hbm [shape: f32[1,1], index: 12, kind: output, shape index: {1}]
  %13 = xla_tuple %s11, %s12
  %s14 = sld [smem:[#allocation0]]
  $region62: #{model3_supervised_pallas.1} parent=0
    _
  %s16 = ssub.s32 1, %s14
  %s17 = scalar_select 0, %s16, %s14
  $region1: #{model3_supervised_pallas.1} parent=0
    #allocation3 [shape = 'u8[512]{0}', space=vmem, size = 0x400, scoped, tag = 'output window, operand 1, single buffered']
    #allocation4 [shape = 's32[1]{0}', space=sflag, size = 0x4, scoped, tag = 'scoped memory for model3_supervised_pallas.1']
    %18 = vsyncpa [#allocation4], 0
    // Predicated region
    $region2: #{model3_supervised_pallas.1} parent=1 // pred_check
      _
    $region3: #{model3_supervised_pallas.1} parent=1 // pred_check_branch
      %20 = sbr.rel (0) target = $region5
    $region4: #{model3_supervised_pallas.1} parent=1 // pred_region
      _
    $region5: #{model3_supervised_pallas.1} parent=1 // pred_fallthru
      _
    // Predicated region
    $region6: #{model3_supervised_pallas.1} parent=1 // pred_check
      _
    $region7: #{model3_supervised_pallas.1} parent=1 // pred_check_branch
      %22 = sbr.rel (0) target = $region9
    $region8: #{model3_supervised_pallas.1} parent=1 // pred_region
      _
    $region9: #{model3_supervised_pallas.1} parent=1 // pred_fallthru
      _
    // Predicated region
    $region10: #{model3_supervised_pallas.1} parent=1 // pred_check
      _
    $region11: #{model3_supervised_pallas.1} parent=1 // pred_check_branch
      %24 = sbr.rel (0) target = $region13
    $region12: #{model3_supervised_pallas.1} parent=1 // pred_region
      _
    $region13: #{model3_supervised_pallas.1} parent=1 // pred_fallthru
      _
    // Predicated region
    $region14: #{model3_supervised_pallas.1} parent=1 // pred_check
      _
    $region15: #{model3_supervised_pallas.1} parent=1 // pred_check_branch
      %26 = sbr.rel (0) target = $region17
    $region16: #{model3_supervised_pallas.1} parent=1 // pred_region
      _
    $region17: #{model3_supervised_pallas.1} parent=1 // pred_fallthru
      _
    // Predicated region
    $region18: #{model3_supervised_pallas.1} parent=1 // pred_check
      _
    $region19: #{model3_supervised_pallas.1} parent=1 // pred_check_branch
      %28 = sbr.rel (0) target = $region21
    $region20: #{model3_supervised_pallas.1} parent=1 // pred_region
      _
    $region21: #{model3_supervised_pallas.1} parent=1 // pred_fallthru
      _
    // Predicated region
    $region22: #{model3_supervised_pallas.1} parent=1 // pred_check
      _
    $region23: #{model3_supervised_pallas.1} parent=1 // pred_check_branch
      %30 = sbr.rel (0) target = $region25
    $region24: #{model3_supervised_pallas.1} parent=1 // pred_region
      _
    $region25: #{model3_supervised_pallas.1} parent=1 // pred_fallthru
      _
    // Predicated region
    $region26: #{model3_supervised_pallas.1} parent=1 // pred_check
      _
    $region27: #{model3_supervised_pallas.1} parent=1 // pred_check_branch
      %32 = sbr.rel (0) target = $region29
    $region28: #{model3_supervised_pallas.1} parent=1 // pred_region
      _
    $region29: #{model3_supervised_pallas.1} parent=1 // pred_fallthru
      _
    // Predicated region
    $region30: #{model3_supervised_pallas.1} parent=1 // pred_check
      _
    $region31: #{model3_supervised_pallas.1} parent=1 // pred_check_branch
      %34 = sbr.rel (0) target = $region33
    $region32: #{model3_supervised_pallas.1} parent=1 // pred_region
      _
    $region33: #{model3_supervised_pallas.1} parent=1 // pred_fallthru
      _
    // Predicated region
    $region34: #{model3_supervised_pallas.1} parent=1 // pred_check
      _
    $region35: #{model3_supervised_pallas.1} parent=1 // pred_check_branch
      %36 = sbr.rel (0) target = $region37
    $region36: #{model3_supervised_pallas.1} parent=1 // pred_region
      _
    $region37: #{model3_supervised_pallas.1} parent=1 // pred_fallthru
      _
    // Predicated region
    $region38: #{model3_supervised_pallas.1} parent=1 // pred_check
      _
    $region39: #{model3_supervised_pallas.1} parent=1 // pred_check_branch
      %38 = sbr.rel (0) target = $region41
    $region40: #{model3_supervised_pallas.1} parent=1 // pred_region
      _
    $region41: #{model3_supervised_pallas.1} parent=1 // pred_fallthru
      _
    // Predicated region
    $region42: #{model3_supervised_pallas.1} parent=1 // pred_check
      _
    $region43: #{model3_supervised_pallas.1} parent=1 // pred_check_branch
      %40 = sbr.rel (0) target = $region45
    $region44: #{model3_supervised_pallas.1} parent=1 // pred_region
      _
    $region45: #{model3_supervised_pallas.1} parent=1 // pred_fallthru
      _
    %v41 = vld [vmem:[%s0] sm:$0xff]
    %v42 = vld [vmem:[%s0 + $0x8] sm:$0xff]
    %v43 = vld [vmem:[%s0 + $0x10] sm:$0xff]
    %v44 = vld [vmem:[%s0 + $0x18] sm:$0xff]
    %v45 = vld [vmem:[%s0 + $0x20] sm:$0xff]
    %v46 = vld [vmem:[%s0 + $0x28] sm:$0xff]
    %v47 = vld [vmem:[%s0 + $0x30] sm:$0xff]
    %v48 = vld [vmem:[%s0 + $0x38] sm:$0xff]
    %v49 = vld [vmem:[%s1] sm:$0xff]
    %v50 = vld [vmem:[%s1 + $0x8] sm:$0xff]
    %v51 = vld [vmem:[%s1 + $0x10] sm:$0xff]
    %v52 = vld [vmem:[%s1 + $0x18] sm:$0xff]
    %v53 = vld [vmem:[%s1 + $0x20] sm:$0xff]
    %v54 = vld [vmem:[%s1 + $0x28] sm:$0xff]
    %v55 = vld [vmem:[%s1 + $0x30] sm:$0xff]
    %v56 = vld [vmem:[%s1 + $0x38] sm:$0xff]
    %v57 = vld [vmem:[%s3] sm:$0x3]
    %v59 = vlaneseq
    %v60 = vshrl.u32 %v59, 7
    %v61 = vsub.s32 0, %v60
    %v62 = vrot.slane %v57, %v61
    %v63 = vlaneseq
    %v64 = vshrl.u32 %v63, 7
    %v65 = vsub.s32 1, %v64
    %v66 = vrot.slane %v57, %v65
    %vm69 = vcmask 261120
    %v71 = vsel %vm69, %v41, 0
    %v74 = vsel %vm69, %v42, 0
    %v77 = vsel %vm69, %v43, 0
    %v80 = vsel %vm69, %v44, 0
    %v83 = vsel %vm69, %v45, 0
    %v86 = vsel %vm69, %v46, 0
    %v89 = vsel %vm69, %v47, 0
    %v92 = vsel %vm69, %v48, 0
    %94 = vmatprep.subr.mxu0 %v50
    %95 = vmatpush1.msra.mxu0 %v49
    %96 = vmatprep.subr.mxu0 %v52
    %97 = vmatpush1.msra.mxu0 %v51
    %98 = vmatprep.subr.mxu0 %v54
    %99 = vmatpush1.msra.mxu0 %v53
    %100 = vmatprep.subr.mxu0 %v56
    %101 = vmatpush1.msra.mxu0 %v55
    %102 = vmatprep.subr.mxu0 0.0
    %103 = vmatpush1.msra.mxu0 0.0
    %104 = vmatprep.subr.mxu0 0.0
    %105 = vmatpush1.msra.mxu0 0.0
    %106 = vmatprep.subr.mxu0 0.0
    %107 = vmatpush1.msra.mxu0 0.0
    %108 = vmatprep.subr.mxu0 0.0
    %109 = vmatpush1.msra.mxu0 0.0
    %110 = vmatprep.subr.mxu0 0.0
    %111 = vmatpush1.msra.mxu0 0.0
    %112 = vmatprep.subr.mxu0 0.0
    %113 = vmatpush1.msra.mxu0 0.0
    %114 = vmatprep.subr.mxu0 0.0
    %115 = vmatpush1.msra.mxu0 0.0
    %116 = vmatprep.subr.mxu0 0.0
    %117 = vmatpush1.msra.mxu0 0.0
    %118 = vmatprep.subr.mxu0 0.0
    %119 = vmatpush1.msra.mxu0 0.0
    %120 = vmatprep.subr.mxu0 0.0
    %121 = vmatpush1.msra.mxu0 0.0
    %122 = vmatprep.subr.mxu0 0.0
    %123 = vmatpush1.msra.mxu0 0.0
    %124 = vmatprep.subr.mxu0 0.0
    %125 = vmatpush1.msra.mxu0 0.0
    %126 = vmatprep.subr.mxu0 0.0
    %127 = vmatpush1.msra.mxu0 0.0
    %128 = vmatprep.subr.mxu0 0.0
    %129 = vmatpush1.msra.mxu0 0.0
    %130 = vmatprep.subr.mxu0 0.0
    %131 = vmatpush1.msra.mxu0 0.0
    %132 = vmatprep.subr.mxu0 0.0
    %133 = vmatpush1.msra.mxu0 0.0
    %134 = vmatprep.subr.mxu0 0.0
    %135 = vmatpush1.msra.mxu0 0.0
    %136 = vmatprep.subr.mxu0 0.0
    %137 = vmatpush1.msra.mxu0 0.0
    %138 = vmatprep.subr.mxu0 0.0
    %139 = vmatpush1.msra.mxu0 0.0
    %140 = vmatprep.subr.mxu0 0.0
    %141 = vmatpush1.msra.mxu0 0.0
    %142 = vmatprep.subr.mxu0 0.0
    %143 = vmatpush1.msra.mxu0 0.0
    %144 = vmatprep.subr.mxu0 0.0
    %145 = vmatpush1.msra.mxu0 0.0
    %146 = vmatprep.subr.mxu0 0.0
    %147 = vmatpush1.msra.mxu0 0.0
    %148 = vmatprep.subr.mxu0 0.0
    %149 = vmatpush1.msra.mxu0 0.0
    %150 = vmatprep.subr.mxu0 0.0
    %151 = vmatpush1.msra.mxu0 0.0
    %152 = vmatprep.subr.mxu0 0.0
    %153 = vmatpush1.msra.mxu0 0.0
    %154 = vmatprep.subr.mxu0 0.0
    %155 = vmatpush1.msra.mxu0 0.0
    %156 = vmatprep.subr.mxu0 0.0
    %157 = vmatpush1.msra.mxu0 0.0
    %158 = vmatprep.mubr.f32.mxu0 0.0
    %159 = vmatmul.mubr.f32.gmra.mrb[0].mxu0 %v71
    %v160 = vpop.f32.mrb[0].mxu0
    %v161 = vadd.f32 %v62, %v160
    %v162 = vpop.f32.mrb[0].mxu0
    %v163 = vadd.f32 %v66, %v162
    %164 = vmatprep.mubr.f32.mxu0 0.0
    %165 = vmatmul.mubr.f32.gmra.mrb[0].mxu0 %v74
    %v166 = vpop.f32.mrb[0].mxu0
    %v167 = vadd.f32 %v62, %v166
    %v168 = vpop.f32.mrb[0].mxu0
    %v169 = vadd.f32 %v66, %v168
    %170 = vmatprep.mubr.f32.mxu0 0.0
    %171 = vmatmul.mubr.f32.gmra.mrb[0].mxu0 %v77
    %v172 = vpop.f32.mrb[0].mxu0
    %v173 = vadd.f32 %v62, %v172
    %v174 = vpop.f32.mrb[0].mxu0
    %v175 = vadd.f32 %v66, %v174
    %176 = vmatprep.mubr.f32.mxu0 0.0
    %177 = vmatmul.mubr.f32.gmra.mrb[0].mxu0 %v80
    %v178 = vpop.f32.mrb[0].mxu0
    %v179 = vadd.f32 %v62, %v178
    %v180 = vpop.f32.mrb[0].mxu0
    %v181 = vadd.f32 %v66, %v180
    %182 = vmatprep.mubr.f32.mxu0 0.0
    %183 = vmatmul.mubr.f32.gmra.mrb[0].mxu0 %v83
    %v184 = vpop.f32.mrb[0].mxu0
    %v185 = vadd.f32 %v62, %v184
    %v186 = vpop.f32.mrb[0].mxu0
    %v187 = vadd.f32 %v66, %v186
    %188 = vmatprep.mubr.f32.mxu0 0.0
    %189 = vmatmul.mubr.f32.gmra.mrb[0].mxu0 %v86
    %v190 = vpop.f32.mrb[0].mxu0
    %v191 = vadd.f32 %v62, %v190
    %v192 = vpop.f32.mrb[0].mxu0
    %v193 = vadd.f32 %v66, %v192
    %194 = vmatprep.mubr.f32.mxu0 0.0
    %195 = vmatmul.mubr.f32.gmra.mrb[0].mxu0 %v89
    %v196 = vpop.f32.mrb[0].mxu0
    %v197 = vadd.f32 %v62, %v196
    %v198 = vpop.f32.mrb[0].mxu0
    %v199 = vadd.f32 %v66, %v198
    %200 = vmatprep.mubr.f32.mxu0 0.0
    %201 = vmatmul.mubr.f32.gmra.mrb[0].mxu0 %v92
    %v202 = vpop.f32.mrb[0].mxu0
    %v203 = vadd.f32 %v62, %v202
    %v204 = vpop.f32.mrb[0].mxu0
    %v205 = vadd.f32 %v66, %v204
    %206 = vdwg.mxu0
    %207 = vst [vmem:[#allocation2] sm:$0xff] %v161
    %208 = vst [vmem:[#allocation2 + $0x8] sm:$0xff] %v163
    %209 = vst [vmem:[#allocation2 + $0x10] sm:$0xff] %v167
    %210 = vst [vmem:[#allocation2 + $0x18] sm:$0xff] %v169
    %211 = vst [vmem:[#allocation2 + $0x20] sm:$0xff] %v173
    %212 = vst [vmem:[#allocation2 + $0x28] sm:$0xff] %v175
    %213 = vst [vmem:[#allocation2 + $0x30] sm:$0xff] %v179
    %214 = vst [vmem:[#allocation2 + $0x38] sm:$0xff] %v181
    %215 = vst [vmem:[#allocation2 + $0x40] sm:$0xff] %v185
    %216 = vst [vmem:[#allocation2 + $0x48] sm:$0xff] %v187
    %217 = vst [vmem:[#allocation2 + $0x50] sm:$0xff] %v191
    %218 = vst [vmem:[#allocation2 + $0x58] sm:$0xff] %v193
    %219 = vst [vmem:[#allocation2 + $0x60] sm:$0xff] %v197
    %220 = vst [vmem:[#allocation2 + $0x68] sm:$0xff] %v199
    %221 = vst [vmem:[#allocation2 + $0x70] sm:$0xff] %v203
    %222 = vst [vmem:[#allocation2 + $0x78] sm:$0xff] %v205
    %v223 = vld [vmem:[%s2] sm:$0xff]
    %v224 = vld [vmem:[%s2 + $0x8] sm:$0xff]
    %v225 = vld [vmem:[%s2 + $0x10] sm:$0xff]
    %v226 = vld [vmem:[%s2 + $0x18] sm:$0xff]
    %v227 = vld [vmem:[%s2 + $0x20] sm:$0xff]
    %v228 = vld [vmem:[%s2 + $0x28] sm:$0xff]
    %v229 = vld [vmem:[%s2 + $0x30] sm:$0xff]
    %v230 = vld [vmem:[%s2 + $0x38] sm:$0xff]
    %v231 = vld [vmem:[%s2 + $0x40] sm:$0xff]
    %v232 = vld [vmem:[%s2 + $0x48] sm:$0xff]
    %v233 = vld [vmem:[%s2 + $0x50] sm:$0xff]
    %v234 = vld [vmem:[%s2 + $0x58] sm:$0xff]
    %v235 = vld [vmem:[%s2 + $0x60] sm:$0xff]
    %v236 = vld [vmem:[%s2 + $0x68] sm:$0xff]
    %v237 = vld [vmem:[%s2 + $0x70] sm:$0xff]
    %v238 = vld [vmem:[%s2 + $0x78] sm:$0xff]
    %s239 = smul.u32 0, 2
    %s240 = smul.addr %s239, 8
    %s241 = scalar_lea.vmem [#allocation2], %s240
    %v242 = vld [vmem:[%s241] sm:$0xff]
    %v243 = vld [vmem:[%s241 + $0x8] sm:$0xff]
    %vm244 = vcmask 523264
    %v246 = vsel %vm244, 0.0, 0
    %248 = vmatprep.subr.mxu0 %v224
    %249 = vmatpush1.msra.mxu0 %v223
    %250 = vmatprep.subr.mxu0 %v226
    %251 = vmatpush1.msra.mxu0 %v225
    %252 = vmatprep.subr.mxu0 %v228
    %253 = vmatpush1.msra.mxu0 %v227
    %254 = vmatprep.subr.mxu0 %v230
    %255 = vmatpush1.msra.mxu0 %v229
    %256 = vmatprep.subr.mxu0 %v232
    %257 = vmatpush1.msra.mxu0 %v231
    %258 = vmatprep.subr.mxu0 %v234
    %259 = vmatpush1.msra.mxu0 %v233
    %260 = vmatprep.subr.mxu0 %v236
    %261 = vmatpush1.msra.mxu0 %v235
    %262 = vmatprep.subr.mxu0 %v238
    %263 = vmatpush1.msra.mxu0 %v237
    %264 = vmatprep.subr.mxu0 0.0
    %265 = vmatpush1.msra.mxu0 0.0
    %266 = vmatprep.subr.mxu0 0.0
    %267 = vmatpush1.msra.mxu0 0.0
    %268 = vmatprep.subr.mxu0 0.0
    %269 = vmatpush1.msra.mxu0 0.0
    %270 = vmatprep.subr.mxu0 0.0
    %271 = vmatpush1.msra.mxu0 0.0
    %272 = vmatprep.subr.mxu0 0.0
    %273 = vmatpush1.msra.mxu0 0.0
    %274 = vmatprep.subr.mxu0 0.0
    %275 = vmatpush1.msra.mxu0 0.0
    %276 = vmatprep.subr.mxu0 0.0
    %277 = vmatpush1.msra.mxu0 0.0
    %278 = vmatprep.subr.mxu0 0.0
    %279 = vmatpush1.msra.mxu0 0.0
    %280 = vmatprep.subr.mxu0 0.0
    %281 = vmatpush1.msra.mxu0 0.0
    %282 = vmatprep.subr.mxu0 0.0
    %283 = vmatpush1.msra.mxu0 0.0
    %284 = vmatprep.subr.mxu0 0.0
    %285 = vmatpush1.msra.mxu0 0.0
    %286 = vmatprep.subr.mxu0 0.0
    %287 = vmatpush1.msra.mxu0 0.0
    %288 = vmatprep.subr.mxu0 0.0
    %289 = vmatpush1.msra.mxu0 0.0
    %290 = vmatprep.subr.mxu0 0.0
    %291 = vmatpush1.msra.mxu0 0.0
    %292 = vmatprep.subr.mxu0 0.0
    %293 = vmatpush1.msra.mxu0 0.0
    %294 = vmatprep.subr.mxu0 0.0
    %295 = vmatpush1.msra.mxu0 0.0
    %296 = vmatprep.subr.mxu0 0.0
    %297 = vmatpush1.msra.mxu0 0.0
    %298 = vmatprep.subr.mxu0 0.0
    %299 = vmatpush1.msra.mxu0 0.0
    %300 = vmatprep.subr.mxu0 0.0
    %301 = vmatpush1.msra.mxu0 0.0
    %302 = vmatprep.subr.mxu0 0.0
    %303 = vmatpush1.msra.mxu0 0.0
    %304 = vmatprep.subr.mxu0 0.0
    %305 = vmatpush1.msra.mxu0 0.0
    %306 = vmatprep.subr.mxu0 0.0
    %307 = vmatpush1.msra.mxu0 0.0
    %308 = vmatprep.subr.mxu0 0.0
    %309 = vmatpush1.msra.mxu0 0.0
    %310 = vmatprep.subr.mxu0 0.0
    %311 = vmatpush1.msra.mxu0 0.0
    %312 = vmatprep.mubr.f32.mxu0 0.0
    %313 = vmatmul.mubr.f32.gmra.mrb[0].mxu0 %v246
    %v314 = vpop.f32.mrb[0].mxu0
    %v315 = vadd.f32 0.0, %v314
    %v316 = vpop.f32.mrb[0].mxu0
    %v317 = vadd.f32 0.0, %v316
    %318 = vdwg.mxu0
    %v319 = vadd.f32 %v242, %v315
    %v320 = vmax.f32 %v319, 0.0
    %321 = vst [vmem:[%s241] sm:$0xff] %v320
    %v322 = vadd.f32 %v243, %v317
    %v323 = vxor.u32 %v322, 2147483648
    %v324 = vmul.f32 %v323, 1.442695
    %v325 = vpow.pop %v324
    %v326 = vadd.f32 %v325, 1.0
    %v327 = vrcp.pop %v326
    %v328 = vmul.f32 1.0, %v327
    %v329 = vtanh.pop %v322
    %v330 = vmul.f32 %v328, 0.0
    %332 = vrot.lane.b32.xlu0 %v329, 64
    %v333 = vpop.permute.xlu0 %332
    %v335 = vmul.f32 %v328, %v333
    %337 = vrot.lane.b32.xlu0 %v335, 32
    %v338 = vpop.permute.xlu0 %337
    %v340 = vadd.f32 %v330, %v338
    %v341 = vtanh.pop %v340
    %343 = vrot.lane.b32.xlu0 %v341, 64
    %v344 = vpop.permute.xlu0 %343
    %v346 = vmul.f32 %v328, %v344
    %348 = vrot.lane.b32.xlu0 %v340, 96
    %v349 = vpop.permute.xlu0 %348
    %352 = vrot.lane.b32.xlu0 %v346, 64
    %v353 = vpop.permute.xlu0 %352
    %v355 = vsel %vm69, %v349, %v353
    %s356 = smul.u32 1, 2
    %s357 = smul.addr %s356, 8
    %s358 = scalar_lea.vmem [#allocation2], %s357
    %v359 = vld [vmem:[%s358] sm:$0xff]
    %v360 = vld [vmem:[%s358 + $0x8] sm:$0xff]
    %v362 = vsel %vm244, %v355, 0
    %364 = vmatprep.subr.mxu0 %v224
    %365 = vmatpush1.msra.mxu0 %v223
    %366 = vmatprep.subr.mxu0 %v226
    %367 = vmatpush1.msra.mxu0 %v225
    %368 = vmatprep.subr.mxu0 %v228
    %369 = vmatpush1.msra.mxu0 %v227
    %370 = vmatprep.subr.mxu0 %v230
    %371 = vmatpush1.msra.mxu0 %v229
    %372 = vmatprep.subr.mxu0 %v232
    %373 = vmatpush1.msra.mxu0 %v231
    %374 = vmatprep.subr.mxu0 %v234
    %375 = vmatpush1.msra.mxu0 %v233
    %376 = vmatprep.subr.mxu0 %v236
    %377 = vmatpush1.msra.mxu0 %v235
    %378 = vmatprep.subr.mxu0 %v238
    %379 = vmatpush1.msra.mxu0 %v237
    %380 = vmatprep.subr.mxu0 0.0
    %381 = vmatpush1.msra.mxu0 0.0
    %382 = vmatprep.subr.mxu0 0.0
    %383 = vmatpush1.msra.mxu0 0.0
    %384 = vmatprep.subr.mxu0 0.0
    %385 = vmatpush1.msra.mxu0 0.0
    %386 = vmatprep.subr.mxu0 0.0
    %387 = vmatpush1.msra.mxu0 0.0
    %388 = vmatprep.subr.mxu0 0.0
    %389 = vmatpush1.msra.mxu0 0.0
    %390 = vmatprep.subr.mxu0 0.0
    %391 = vmatpush1.msra.mxu0 0.0
    %392 = vmatprep.subr.mxu0 0.0
    %393 = vmatpush1.msra.mxu0 0.0
    %394 = vmatprep.subr.mxu0 0.0
    %395 = vmatpush1.msra.mxu0 0.0
    %396 = vmatprep.subr.mxu0 0.0
    %397 = vmatpush1.msra.mxu0 0.0
    %398 = vmatprep.subr.mxu0 0.0
    %399 = vmatpush1.msra.mxu0 0.0
    %400 = vmatprep.subr.mxu0 0.0
    %401 = vmatpush1.msra.mxu0 0.0
    %402 = vmatprep.subr.mxu0 0.0
    %403 = vmatpush1.msra.mxu0 0.0
    %404 = vmatprep.subr.mxu0 0.0
    %405 = vmatpush1.msra.mxu0 0.0
    %406 = vmatprep.subr.mxu0 0.0
    %407 = vmatpush1.msra.mxu0 0.0
    %408 = vmatprep.subr.mxu0 0.0
    %409 = vmatpush1.msra.mxu0 0.0
    %410 = vmatprep.subr.mxu0 0.0
    %411 = vmatpush1.msra.mxu0 0.0
    %412 = vmatprep.subr.mxu0 0.0
    %413 = vmatpush1.msra.mxu0 0.0
    %414 = vmatprep.subr.mxu0 0.0
    %415 = vmatpush1.msra.mxu0 0.0
    %416 = vmatprep.subr.mxu0 0.0
    %417 = vmatpush1.msra.mxu0 0.0
    %418 = vmatprep.subr.mxu0 0.0
    %419 = vmatpush1.msra.mxu0 0.0
    %420 = vmatprep.subr.mxu0 0.0
    %421 = vmatpush1.msra.mxu0 0.0
    %422 = vmatprep.subr.mxu0 0.0
    %423 = vmatpush1.msra.mxu0 0.0
    %424 = vmatprep.subr.mxu0 0.0
    %425 = vmatpush1.msra.mxu0 0.0
    %426 = vmatprep.subr.mxu0 0.0
    %427 = vmatpush1.msra.mxu0 0.0
    %428 = vmatprep.mubr.f32.mxu0 0.0
    %429 = vmatmul.mubr.f32.gmra.mrb[0].mxu0 %v362
    %v430 = vpop.f32.mrb[0].mxu0
    %v431 = vadd.f32 0.0, %v430
    %v432 = vpop.f32.mrb[0].mxu0
    %v433 = vadd.f32 0.0, %v432
    %434 = vdwg.mxu0
    %v435 = vadd.f32 %v359, %v431
    %v436 = vmax.f32 %v435, 0.0
    %437 = vst [vmem:[%s358] sm:$0xff] %v436
    %v438 = vadd.f32 %v360, %v433
    %v439 = vxor.u32 %v438, 2147483648
    %v440 = vmul.f32 %v439, 1.442695
    %v441 = vpow.pop %v440
    %v442 = vadd.f32 %v441, 1.0
    %v443 = vrcp.pop %v442
    %v444 = vmul.f32 1.0, %v443
    %v445 = vtanh.pop %v438
    %446 = vrot.lane.b32.xlu0 %v355, 32
    %v447 = vpop.permute.xlu0 %446
    %v449 = vmul.f32 %v444, %v447
    %451 = vrot.lane.b32.xlu0 %v445, 64
    %v452 = vpop.permute.xlu0 %451
    %v454 = vmul.f32 %v444, %v452
    %456 = vrot.lane.b32.xlu0 %v454, 32
    %v457 = vpop.permute.xlu0 %456
    %v459 = vadd.f32 %v449, %v457
    %v460 = vtanh.pop %v459
    %462 = vrot.lane.b32.xlu0 %v460, 64
    %v463 = vpop.permute.xlu0 %462
    %v465 = vmul.f32 %v444, %v463
    %467 = vrot.lane.b32.xlu0 %v459, 96
    %v468 = vpop.permute.xlu0 %467
    %471 = vrot.lane.b32.xlu0 %v465, 64
    %v472 = vpop.permute.xlu0 %471
    %v474 = vsel %vm69, %v468, %v472
    %s475 = smul.u32 2, 2
    %s476 = smul.addr %s475, 8
    %s477 = scalar_lea.vmem [#allocation2], %s476
    %v478 = vld [vmem:[%s477] sm:$0xff]
    %v479 = vld [vmem:[%s477 + $0x8] sm:$0xff]
    %v481 = vsel %vm244, %v474, 0
    %483 = vmatprep.subr.mxu0 %v224
    %484 = vmatpush1.msra.mxu0 %v223
    %485 = vmatprep.subr.mxu0 %v226
    %486 = vmatpush1.msra.mxu0 %v225
    %487 = vmatprep.subr.mxu0 %v228
    %488 = vmatpush1.msra.mxu0 %v227
    %489 = vmatprep.subr.mxu0 %v230
    %490 = vmatpush1.msra.mxu0 %v229
    %491 = vmatprep.subr.mxu0 %v232
    %492 = vmatpush1.msra.mxu0 %v231
    %493 = vmatprep.subr.mxu0 %v234
    %494 = vmatpush1.msra.mxu0 %v233
    %495 = vmatprep.subr.mxu0 %v236
    %496 = vmatpush1.msra.mxu0 %v235
    %497 = vmatprep.subr.mxu0 %v238
    %498 = vmatpush1.msra.mxu0 %v237
    %499 = vmatprep.subr.mxu0 0.0
    %500 = vmatpush1.msra.mxu0 0.0
    %501 = vmatprep.subr.mxu0 0.0
    %502 = vmatpush1.msra.mxu0 0.0
    %503 = vmatprep.subr.mxu0 0.0
    %504 = vmatpush1.msra.mxu0 0.0
    %505 = vmatprep.subr.mxu0 0.0
    %506 = vmatpush1.msra.mxu0 0.0
    %507 = vmatprep.subr.mxu0 0.0
    %508 = vmatpush1.msra.mxu0 0.0
    %509 = vmatprep.subr.mxu0 0.0
    %510 = vmatpush1.msra.mxu0 0.0
    %511 = vmatprep.subr.mxu0 0.0
    %512 = vmatpush1.msra.mxu0 0.0
    %513 = vmatprep.subr.mxu0 0.0
    %514 = vmatpush1.msra.mxu0 0.0
    %515 = vmatprep.subr.mxu0 0.0
    %516 = vmatpush1.msra.mxu0 0.0
    %517 = vmatprep.subr.mxu0 0.0
    %518 = vmatpush1.msra.mxu0 0.0
    %519 = vmatprep.subr.mxu0 0.0
    %520 = vmatpush1.msra.mxu0 0.0
    %521 = vmatprep.subr.mxu0 0.0
    %522 = vmatpush1.msra.mxu0 0.0
    %523 = vmatprep.subr.mxu0 0.0
    %524 = vmatpush1.msra.mxu0 0.0
    %525 = vmatprep.subr.mxu0 0.0
    %526 = vmatpush1.msra.mxu0 0.0
    %527 = vmatprep.subr.mxu0 0.0
    %528 = vmatpush1.msra.mxu0 0.0
    %529 = vmatprep.subr.mxu0 0.0
    %530 = vmatpush1.msra.mxu0 0.0
    %531 = vmatprep.subr.mxu0 0.0
    %532 = vmatpush1.msra.mxu0 0.0
    %533 = vmatprep.subr.mxu0 0.0
    %534 = vmatpush1.msra.mxu0 0.0
    %535 = vmatprep.subr.mxu0 0.0
    %536 = vmatpush1.msra.mxu0 0.0
    %537 = vmatprep.subr.mxu0 0.0
    %538 = vmatpush1.msra.mxu0 0.0
    %539 = vmatprep.subr.mxu0 0.0
    %540 = vmatpush1.msra.mxu0 0.0
    %541 = vmatprep.subr.mxu0 0.0
    %542 = vmatpush1.msra.mxu0 0.0
    %543 = vmatprep.subr.mxu0 0.0
    %544 = vmatpush1.msra.mxu0 0.0
    %545 = vmatprep.subr.mxu0 0.0
    %546 = vmatpush1.msra.mxu0 0.0
    %547 = vmatprep.mubr.f32.mxu0 0.0
    %548 = vmatmul.mubr.f32.gmra.mrb[0].mxu0 %v481
    %v549 = vpop.f32.mrb[0].mxu0
    %v550 = vadd.f32 0.0, %v549
    %v551 = vpop.f32.mrb[0].mxu0
    %v552 = vadd.f32 0.0, %v551
    %553 = vdwg.mxu0
    %v554 = vadd.f32 %v478, %v550
    %v555 = vmax.f32 %v554, 0.0
    %556 = vst [vmem:[%s477] sm:$0xff] %v555
    %v557 = vadd.f32 %v479, %v552
    %v558 = vxor.u32 %v557, 2147483648
    %v559 = vmul.f32 %v558, 1.442695
    %v560 = vpow.pop %v559
    %v561 = vadd.f32 %v560, 1.0
    %v562 = vrcp.pop %v561
    %v563 = vmul.f32 1.0, %v562
    %v564 = vtanh.pop %v557
    %565 = vrot.lane.b32.xlu0 %v474, 32
    %v566 = vpop.permute.xlu0 %565
    %v568 = vmul.f32 %v563, %v566
    %570 = vrot.lane.b32.xlu0 %v564, 64
    %v571 = vpop.permute.xlu0 %570
    %v573 = vmul.f32 %v563, %v571
    %575 = vrot.lane.b32.xlu0 %v573, 32
    %v576 = vpop.permute.xlu0 %575
    %v578 = vadd.f32 %v568, %v576
    %v579 = vtanh.pop %v578
    %581 = vrot.lane.b32.xlu0 %v579, 64
    %v582 = vpop.permute.xlu0 %581
    %v584 = vmul.f32 %v563, %v582
    %586 = vrot.lane.b32.xlu0 %v578, 96
    %v587 = vpop.permute.xlu0 %586
    %590 = vrot.lane.b32.xlu0 %v584, 64
    %v591 = vpop.permute.xlu0 %590
    %v593 = vsel %vm69, %v587, %v591
    %s594 = smul.u32 3, 2
    %s595 = smul.addr %s594, 8
    %s596 = scalar_lea.vmem [#allocation2], %s595
    %v597 = vld [vmem:[%s596] sm:$0xff]
    %v598 = vld [vmem:[%s596 + $0x8] sm:$0xff]
    %v600 = vsel %vm244, %v593, 0
    %602 = vmatprep.subr.mxu0 %v224
    %603 = vmatpush1.msra.mxu0 %v223
    %604 = vmatprep.subr.mxu0 %v226
    %605 = vmatpush1.msra.mxu0 %v225
    %606 = vmatprep.subr.mxu0 %v228
    %607 = vmatpush1.msra.mxu0 %v227
    %608 = vmatprep.subr.mxu0 %v230
    %609 = vmatpush1.msra.mxu0 %v229
    %610 = vmatprep.subr.mxu0 %v232
    %611 = vmatpush1.msra.mxu0 %v231
    %612 = vmatprep.subr.mxu0 %v234
    %613 = vmatpush1.msra.mxu0 %v233
    %614 = vmatprep.subr.mxu0 %v236
    %615 = vmatpush1.msra.mxu0 %v235
    %616 = vmatprep.subr.mxu0 %v238
    %617 = vmatpush1.msra.mxu0 %v237
    %618 = vmatprep.subr.mxu0 0.0
    %619 = vmatpush1.msra.mxu0 0.0
    %620 = vmatprep.subr.mxu0 0.0
    %621 = vmatpush1.msra.mxu0 0.0
    %622 = vmatprep.subr.mxu0 0.0
    %623 = vmatpush1.msra.mxu0 0.0
    %624 = vmatprep.subr.mxu0 0.0
    %625 = vmatpush1.msra.mxu0 0.0
    %626 = vmatprep.subr.mxu0 0.0
    %627 = vmatpush1.msra.mxu0 0.0
    %628 = vmatprep.subr.mxu0 0.0
    %629 = vmatpush1.msra.mxu0 0.0
    %630 = vmatprep.subr.mxu0 0.0
    %631 = vmatpush1.msra.mxu0 0.0
    %632 = vmatprep.subr.mxu0 0.0
    %633 = vmatpush1.msra.mxu0 0.0
    %634 = vmatprep.subr.mxu0 0.0
    %635 = vmatpush1.msra.mxu0 0.0
    %636 = vmatprep.subr.mxu0 0.0
    %637 = vmatpush1.msra.mxu0 0.0
    %638 = vmatprep.subr.mxu0 0.0
    %639 = vmatpush1.msra.mxu0 0.0
    %640 = vmatprep.subr.mxu0 0.0
    %641 = vmatpush1.msra.mxu0 0.0
    %642 = vmatprep.subr.mxu0 0.0
    %643 = vmatpush1.msra.mxu0 0.0
    %644 = vmatprep.subr.mxu0 0.0
    %645 = vmatpush1.msra.mxu0 0.0
    %646 = vmatprep.subr.mxu0 0.0
    %647 = vmatpush1.msra.mxu0 0.0
    %648 = vmatprep.subr.mxu0 0.0
    %649 = vmatpush1.msra.mxu0 0.0
    %650 = vmatprep.subr.mxu0 0.0
    %651 = vmatpush1.msra.mxu0 0.0
    %652 = vmatprep.subr.mxu0 0.0
    %653 = vmatpush1.msra.mxu0 0.0
    %654 = vmatprep.subr.mxu0 0.0
    %655 = vmatpush1.msra.mxu0 0.0
    %656 = vmatprep.subr.mxu0 0.0
    %657 = vmatpush1.msra.mxu0 0.0
    %658 = vmatprep.subr.mxu0 0.0
    %659 = vmatpush1.msra.mxu0 0.0
    %660 = vmatprep.subr.mxu0 0.0
    %661 = vmatpush1.msra.mxu0 0.0
    %662 = vmatprep.subr.mxu0 0.0
    %663 = vmatpush1.msra.mxu0 0.0
    %664 = vmatprep.subr.mxu0 0.0
    %665 = vmatpush1.msra.mxu0 0.0
    %666 = vmatprep.mubr.f32.mxu0 0.0
    %667 = vmatmul.mubr.f32.gmra.mrb[0].mxu0 %v600
    %v668 = vpop.f32.mrb[0].mxu0
    %v669 = vadd.f32 0.0, %v668
    %v670 = vpop.f32.mrb[0].mxu0
    %v671 = vadd.f32 0.0, %v670
    %672 = vdwg.mxu0
    %v673 = vadd.f32 %v597, %v669
    %v674 = vmax.f32 %v673, 0.0
    %675 = vst [vmem:[%s596] sm:$0xff] %v674
    %v676 = vadd.f32 %v598, %v671
    %v677 = vxor.u32 %v676, 2147483648
    %v678 = vmul.f32 %v677, 1.442695
    %v679 = vpow.pop %v678
    %v680 = vadd.f32 %v679, 1.0
    %v681 = vrcp.pop %v680
    %v682 = vmul.f32 1.0, %v681
    %v683 = vtanh.pop %v676
    %684 = vrot.lane.b32.xlu0 %v593, 32
    %v685 = vpop.permute.xlu0 %684
    %v687 = vmul.f32 %v682, %v685
    %689 = vrot.lane.b32.xlu0 %v683, 64
    %v690 = vpop.permute.xlu0 %689
    %v692 = vmul.f32 %v682, %v690
    %694 = vrot.lane.b32.xlu0 %v692, 32
    %v695 = vpop.permute.xlu0 %694
    %v697 = vadd.f32 %v687, %v695
    %v698 = vtanh.pop %v697
    %700 = vrot.lane.b32.xlu0 %v698, 64
    %v701 = vpop.permute.xlu0 %700
    %v703 = vmul.f32 %v682, %v701
    %705 = vrot.lane.b32.xlu0 %v697, 96
    %v706 = vpop.permute.xlu0 %705
    %709 = vrot.lane.b32.xlu0 %v703, 64
    %v710 = vpop.permute.xlu0 %709
    %v712 = vsel %vm69, %v706, %v710
    %s713 = smul.u32 4, 2
    %s714 = smul.addr %s713, 8
    %s715 = scalar_lea.vmem [#allocation2], %s714
    %v716 = vld [vmem:[%s715] sm:$0xff]
    %v717 = vld [vmem:[%s715 + $0x8] sm:$0xff]
    %v719 = vsel %vm244, %v712, 0
    %721 = vmatprep.subr.mxu0 %v224
    %722 = vmatpush1.msra.mxu0 %v223
    %723 = vmatprep.subr.mxu0 %v226
    %724 = vmatpush1.msra.mxu0 %v225
    %725 = vmatprep.subr.mxu0 %v228
    %726 = vmatpush1.msra.mxu0 %v227
    %727 = vmatprep.subr.mxu0 %v230
    %728 = vmatpush1.msra.mxu0 %v229
    %729 = vmatprep.subr.mxu0 %v232
    %730 = vmatpush1.msra.mxu0 %v231
    %731 = vmatprep.subr.mxu0 %v234
    %732 = vmatpush1.msra.mxu0 %v233
    %733 = vmatprep.subr.mxu0 %v236
    %734 = vmatpush1.msra.mxu0 %v235
    %735 = vmatprep.subr.mxu0 %v238
    %736 = vmatpush1.msra.mxu0 %v237
    %737 = vmatprep.subr.mxu0 0.0
    %738 = vmatpush1.msra.mxu0 0.0
    %739 = vmatprep.subr.mxu0 0.0
    %740 = vmatpush1.msra.mxu0 0.0
    %741 = vmatprep.subr.mxu0 0.0
    %742 = vmatpush1.msra.mxu0 0.0
    %743 = vmatprep.subr.mxu0 0.0
    %744 = vmatpush1.msra.mxu0 0.0
    %745 = vmatprep.subr.mxu0 0.0
    %746 = vmatpush1.msra.mxu0 0.0
    %747 = vmatprep.subr.mxu0 0.0
    %748 = vmatpush1.msra.mxu0 0.0
    %749 = vmatprep.subr.mxu0 0.0
    %750 = vmatpush1.msra.mxu0 0.0
    %751 = vmatprep.subr.mxu0 0.0
    %752 = vmatpush1.msra.mxu0 0.0
    %753 = vmatprep.subr.mxu0 0.0
    %754 = vmatpush1.msra.mxu0 0.0
    %755 = vmatprep.subr.mxu0 0.0
    %756 = vmatpush1.msra.mxu0 0.0
    %757 = vmatprep.subr.mxu0 0.0
    %758 = vmatpush1.msra.mxu0 0.0
    %759 = vmatprep.subr.mxu0 0.0
    %760 = vmatpush1.msra.mxu0 0.0
    %761 = vmatprep.subr.mxu0 0.0
    %762 = vmatpush1.msra.mxu0 0.0
    %763 = vmatprep.subr.mxu0 0.0
    %764 = vmatpush1.msra.mxu0 0.0
    %765 = vmatprep.subr.mxu0 0.0
    %766 = vmatpush1.msra.mxu0 0.0
    %767 = vmatprep.subr.mxu0 0.0
    %768 = vmatpush1.msra.mxu0 0.0
    %769 = vmatprep.subr.mxu0 0.0
    %770 = vmatpush1.msra.mxu0 0.0
    %771 = vmatprep.subr.mxu0 0.0
    %772 = vmatpush1.msra.mxu0 0.0
    %773 = vmatprep.subr.mxu0 0.0
    %774 = vmatpush1.msra.mxu0 0.0
    %775 = vmatprep.subr.mxu0 0.0
    %776 = vmatpush1.msra.mxu0 0.0
    %777 = vmatprep.subr.mxu0 0.0
    %778 = vmatpush1.msra.mxu0 0.0
    %779 = vmatprep.subr.mxu0 0.0
    %780 = vmatpush1.msra.mxu0 0.0
    %781 = vmatprep.subr.mxu0 0.0
    %782 = vmatpush1.msra.mxu0 0.0
    %783 = vmatprep.subr.mxu0 0.0
    %784 = vmatpush1.msra.mxu0 0.0
    %785 = vmatprep.mubr.f32.mxu0 0.0
    %786 = vmatmul.mubr.f32.gmra.mrb[0].mxu0 %v719
    %v787 = vpop.f32.mrb[0].mxu0
    %v788 = vadd.f32 0.0, %v787
    %v789 = vpop.f32.mrb[0].mxu0
    %v790 = vadd.f32 0.0, %v789
    %791 = vdwg.mxu0
    %v792 = vadd.f32 %v716, %v788
    %v793 = vmax.f32 %v792, 0.0
    %794 = vst [vmem:[%s715] sm:$0xff] %v793
    %v795 = vadd.f32 %v717, %v790
    %v796 = vxor.u32 %v795, 2147483648
    %v797 = vmul.f32 %v796, 1.442695
    %v798 = vpow.pop %v797
    %v799 = vadd.f32 %v798, 1.0
    %v800 = vrcp.pop %v799
    %v801 = vmul.f32 1.0, %v800
    %v802 = vtanh.pop %v795
    %803 = vrot.lane.b32.xlu0 %v712, 32
    %v804 = vpop.permute.xlu0 %803
    %v806 = vmul.f32 %v801, %v804
    %808 = vrot.lane.b32.xlu0 %v802, 64
    %v809 = vpop.permute.xlu0 %808
    %v811 = vmul.f32 %v801, %v809
    %813 = vrot.lane.b32.xlu0 %v811, 32
    %v814 = vpop.permute.xlu0 %813
    %v816 = vadd.f32 %v806, %v814
    %v817 = vtanh.pop %v816
    %819 = vrot.lane.b32.xlu0 %v817, 64
    %v820 = vpop.permute.xlu0 %819
    %v822 = vmul.f32 %v801, %v820
    %824 = vrot.lane.b32.xlu0 %v816, 96
    %v825 = vpop.permute.xlu0 %824
    %828 = vrot.lane.b32.xlu0 %v822, 64
    %v829 = vpop.permute.xlu0 %828
    %v831 = vsel %vm69, %v825, %v829
    %s832 = smul.u32 5, 2
    %s833 = smul.addr %s832, 8
    %s834 = scalar_lea.vmem [#allocation2], %s833
    %v835 = vld [vmem:[%s834] sm:$0xff]
    %v836 = vld [vmem:[%s834 + $0x8] sm:$0xff]
    %v838 = vsel %vm244, %v831, 0
    %840 = vmatprep.subr.mxu0 %v224
    %841 = vmatpush1.msra.mxu0 %v223
    %842 = vmatprep.subr.mxu0 %v226
    %843 = vmatpush1.msra.mxu0 %v225
    %844 = vmatprep.subr.mxu0 %v228
    %845 = vmatpush1.msra.mxu0 %v227
    %846 = vmatprep.subr.mxu0 %v230
    %847 = vmatpush1.msra.mxu0 %v229
    %848 = vmatprep.subr.mxu0 %v232
    %849 = vmatpush1.msra.mxu0 %v231
    %850 = vmatprep.subr.mxu0 %v234
    %851 = vmatpush1.msra.mxu0 %v233
    %852 = vmatprep.subr.mxu0 %v236
    %853 = vmatpush1.msra.mxu0 %v235
    %854 = vmatprep.subr.mxu0 %v238
    %855 = vmatpush1.msra.mxu0 %v237
    %856 = vmatprep.subr.mxu0 0.0
    %857 = vmatpush1.msra.mxu0 0.0
    %858 = vmatprep.subr.mxu0 0.0
    %859 = vmatpush1.msra.mxu0 0.0
    %860 = vmatprep.subr.mxu0 0.0
    %861 = vmatpush1.msra.mxu0 0.0
    %862 = vmatprep.subr.mxu0 0.0
    %863 = vmatpush1.msra.mxu0 0.0
    %864 = vmatprep.subr.mxu0 0.0
    %865 = vmatpush1.msra.mxu0 0.0
    %866 = vmatprep.subr.mxu0 0.0
    %867 = vmatpush1.msra.mxu0 0.0
    %868 = vmatprep.subr.mxu0 0.0
    %869 = vmatpush1.msra.mxu0 0.0
    %870 = vmatprep.subr.mxu0 0.0
    %871 = vmatpush1.msra.mxu0 0.0
    %872 = vmatprep.subr.mxu0 0.0
    %873 = vmatpush1.msra.mxu0 0.0
    %874 = vmatprep.subr.mxu0 0.0
    %875 = vmatpush1.msra.mxu0 0.0
    %876 = vmatprep.subr.mxu0 0.0
    %877 = vmatpush1.msra.mxu0 0.0
    %878 = vmatprep.subr.mxu0 0.0
    %879 = vmatpush1.msra.mxu0 0.0
    %880 = vmatprep.subr.mxu0 0.0
    %881 = vmatpush1.msra.mxu0 0.0
    %882 = vmatprep.subr.mxu0 0.0
    %883 = vmatpush1.msra.mxu0 0.0
    %884 = vmatprep.subr.mxu0 0.0
    %885 = vmatpush1.msra.mxu0 0.0
    %886 = vmatprep.subr.mxu0 0.0
    %887 = vmatpush1.msra.mxu0 0.0
    %888 = vmatprep.subr.mxu0 0.0
    %889 = vmatpush1.msra.mxu0 0.0
    %890 = vmatprep.subr.mxu0 0.0
    %891 = vmatpush1.msra.mxu0 0.0
    %892 = vmatprep.subr.mxu0 0.0
    %893 = vmatpush1.msra.mxu0 0.0
    %894 = vmatprep.subr.mxu0 0.0
    %895 = vmatpush1.msra.mxu0 0.0
    %896 = vmatprep.subr.mxu0 0.0
    %897 = vmatpush1.msra.mxu0 0.0
    %898 = vmatprep.subr.mxu0 0.0
    %899 = vmatpush1.msra.mxu0 0.0
    %900 = vmatprep.subr.mxu0 0.0
    %901 = vmatpush1.msra.mxu0 0.0
    %902 = vmatprep.subr.mxu0 0.0
    %903 = vmatpush1.msra.mxu0 0.0
    %904 = vmatprep.mubr.f32.mxu0 0.0
    %905 = vmatmul.mubr.f32.gmra.mrb[0].mxu0 %v838
    %v906 = vpop.f32.mrb[0].mxu0
    %v907 = vadd.f32 0.0, %v906
    %v908 = vpop.f32.mrb[0].mxu0
    %v909 = vadd.f32 0.0, %v908
    %910 = vdwg.mxu0
    %v911 = vadd.f32 %v835, %v907
    %v912 = vmax.f32 %v911, 0.0
    %913 = vst [vmem:[%s834] sm:$0xff] %v912
    %v914 = vadd.f32 %v836, %v909
    %v915 = vxor.u32 %v914, 2147483648
    %v916 = vmul.f32 %v915, 1.442695
    %v917 = vpow.pop %v916
    %v918 = vadd.f32 %v917, 1.0
    %v919 = vrcp.pop %v918
    %v920 = vmul.f32 1.0, %v919
    %v921 = vtanh.pop %v914
    %922 = vrot.lane.b32.xlu0 %v831, 32
    %v923 = vpop.permute.xlu0 %922
    %v925 = vmul.f32 %v920, %v923
    %927 = vrot.lane.b32.xlu0 %v921, 64
    %v928 = vpop.permute.xlu0 %927
    %v930 = vmul.f32 %v920, %v928
    %932 = vrot.lane.b32.xlu0 %v930, 32
    %v933 = vpop.permute.xlu0 %932
    %v935 = vadd.f32 %v925, %v933
    %v936 = vtanh.pop %v935
    %938 = vrot.lane.b32.xlu0 %v936, 64
    %v939 = vpop.permute.xlu0 %938
    %v941 = vmul.f32 %v920, %v939
    %943 = vrot.lane.b32.xlu0 %v935, 96
    %v944 = vpop.permute.xlu0 %943
    %947 = vrot.lane.b32.xlu0 %v941, 64
    %v948 = vpop.permute.xlu0 %947
    %v950 = vsel %vm69, %v944, %v948
    %s951 = smul.u32 6, 2
    %s952 = smul.addr %s951, 8
    %s953 = scalar_lea.vmem [#allocation2], %s952
    %v954 = vld [vmem:[%s953] sm:$0xff]
    %v955 = vld [vmem:[%s953 + $0x8] sm:$0xff]
    %v957 = vsel %vm244, %v950, 0
    %959 = vmatprep.subr.mxu0 %v224
    %960 = vmatpush1.msra.mxu0 %v223
    %961 = vmatprep.subr.mxu0 %v226
    %962 = vmatpush1.msra.mxu0 %v225
    %963 = vmatprep.subr.mxu0 %v228
    %964 = vmatpush1.msra.mxu0 %v227
    %965 = vmatprep.subr.mxu0 %v230
    %966 = vmatpush1.msra.mxu0 %v229
    %967 = vmatprep.subr.mxu0 %v232
    %968 = vmatpush1.msra.mxu0 %v231
    %969 = vmatprep.subr.mxu0 %v234
    %970 = vmatpush1.msra.mxu0 %v233
    %971 = vmatprep.subr.mxu0 %v236
    %972 = vmatpush1.msra.mxu0 %v235
    %973 = vmatprep.subr.mxu0 %v238
    %974 = vmatpush1.msra.mxu0 %v237
    %975 = vmatprep.subr.mxu0 0.0
    %976 = vmatpush1.msra.mxu0 0.0
    %977 = vmatprep.subr.mxu0 0.0
    %978 = vmatpush1.msra.mxu0 0.0
    %979 = vmatprep.subr.mxu0 0.0
    %980 = vmatpush1.msra.mxu0 0.0
    %981 = vmatprep.subr.mxu0 0.0
    %982 = vmatpush1.msra.mxu0 0.0
    %983 = vmatprep.subr.mxu0 0.0
    %984 = vmatpush1.msra.mxu0 0.0
    %985 = vmatprep.subr.mxu0 0.0
    %986 = vmatpush1.msra.mxu0 0.0
    %987 = vmatprep.subr.mxu0 0.0
    %988 = vmatpush1.msra.mxu0 0.0
    %989 = vmatprep.subr.mxu0 0.0
    %990 = vmatpush1.msra.mxu0 0.0
    %991 = vmatprep.subr.mxu0 0.0
    %992 = vmatpush1.msra.mxu0 0.0
    %993 = vmatprep.subr.mxu0 0.0
    %994 = vmatpush1.msra.mxu0 0.0
    %995 = vmatprep.subr.mxu0 0.0
    %996 = vmatpush1.msra.mxu0 0.0
    %997 = vmatprep.subr.mxu0 0.0
    %998 = vmatpush1.msra.mxu0 0.0
    %999 = vmatprep.subr.mxu0 0.0
    %1000 = vmatpush1.msra.mxu0 0.0
    %1001 = vmatprep.subr.mxu0 0.0
    %1002 = vmatpush1.msra.mxu0 0.0
    %1003 = vmatprep.subr.mxu0 0.0
    %1004 = vmatpush1.msra.mxu0 0.0
    %1005 = vmatprep.subr.mxu0 0.0
    %1006 = vmatpush1.msra.mxu0 0.0
    %1007 = vmatprep.subr.mxu0 0.0
    %1008 = vmatpush1.msra.mxu0 0.0
    %1009 = vmatprep.subr.mxu0 0.0
    %1010 = vmatpush1.msra.mxu0 0.0
    %1011 = vmatprep.subr.mxu0 0.0
    %1012 = vmatpush1.msra.mxu0 0.0
    %1013 = vmatprep.subr.mxu0 0.0
    %1014 = vmatpush1.msra.mxu0 0.0
    %1015 = vmatprep.subr.mxu0 0.0
    %1016 = vmatpush1.msra.mxu0 0.0
    %1017 = vmatprep.subr.mxu0 0.0
    %1018 = vmatpush1.msra.mxu0 0.0
    %1019 = vmatprep.subr.mxu0 0.0
    %1020 = vmatpush1.msra.mxu0 0.0
    %1021 = vmatprep.subr.mxu0 0.0
    %1022 = vmatpush1.msra.mxu0 0.0
    %1023 = vmatprep.mubr.f32.mxu0 0.0
    %1024 = vmatmul.mubr.f32.gmra.mrb[0].mxu0 %v957
    %v1025 = vpop.f32.mrb[0].mxu0
    %v1026 = vadd.f32 0.0, %v1025
    %v1027 = vpop.f32.mrb[0].mxu0
    %v1028 = vadd.f32 0.0, %v1027
    %1029 = vdwg.mxu0
    %v1030 = vadd.f32 %v954, %v1026
    %v1031 = vmax.f32 %v1030, 0.0
    %1032 = vst [vmem:[%s953] sm:$0xff] %v1031
    %v1033 = vadd.f32 %v955, %v1028
    %v1034 = vxor.u32 %v1033, 2147483648
    %v1035 = vmul.f32 %v1034, 1.442695
    %v1036 = vpow.pop %v1035
    %v1037 = vadd.f32 %v1036, 1.0
    %v1038 = vrcp.pop %v1037
    %v1039 = vmul.f32 1.0, %v1038
    %v1040 = vtanh.pop %v1033
    %1041 = vrot.lane.b32.xlu0 %v950, 32
    %v1042 = vpop.permute.xlu0 %1041
    %v1044 = vmul.f32 %v1039, %v1042
    %1046 = vrot.lane.b32.xlu0 %v1040, 64
    %v1047 = vpop.permute.xlu0 %1046
    %v1049 = vmul.f32 %v1039, %v1047
    %1051 = vrot.lane.b32.xlu0 %v1049, 32
    %v1052 = vpop.permute.xlu0 %1051
    %v1054 = vadd.f32 %v1044, %v1052
    %v1055 = vtanh.pop %v1054
    %1057 = vrot.lane.b32.xlu0 %v1055, 64
    %v1058 = vpop.permute.xlu0 %1057
    %v1060 = vmul.f32 %v1039, %v1058
    %1062 = vrot.lane.b32.xlu0 %v1054, 96
    %v1063 = vpop.permute.xlu0 %1062
    %1066 = vrot.lane.b32.xlu0 %v1060, 64
    %v1067 = vpop.permute.xlu0 %1066
    %v1069 = vsel %vm69, %v1063, %v1067
    %s1070 = smul.u32 7, 2
    %s1071 = smul.addr %s1070, 8
    %s1072 = scalar_lea.vmem [#allocation2], %s1071
    %v1073 = vld [vmem:[%s1072] sm:$0xff]
    %v1074 = vld [vmem:[%s1072 + $0x8] sm:$0xff]
    %v1076 = vsel %vm244, %v1069, 0
    %1078 = vmatprep.subr.mxu0 %v224
    %1079 = vmatpush1.msra.mxu0 %v223
    %1080 = vmatprep.subr.mxu0 %v226
    %1081 = vmatpush1.msra.mxu0 %v225
    %1082 = vmatprep.subr.mxu0 %v228
    %1083 = vmatpush1.msra.mxu0 %v227
    %1084 = vmatprep.subr.mxu0 %v230
    %1085 = vmatpush1.msra.mxu0 %v229
    %1086 = vmatprep.subr.mxu0 %v232
    %1087 = vmatpush1.msra.mxu0 %v231
    %1088 = vmatprep.subr.mxu0 %v234
    %1089 = vmatpush1.msra.mxu0 %v233
    %1090 = vmatprep.subr.mxu0 %v236
    %1091 = vmatpush1.msra.mxu0 %v235
    %1092 = vmatprep.subr.mxu0 %v238
    %1093 = vmatpush1.msra.mxu0 %v237
    %1094 = vmatprep.subr.mxu0 0.0
    %1095 = vmatpush1.msra.mxu0 0.0
    %1096 = vmatprep.subr.mxu0 0.0
    %1097 = vmatpush1.msra.mxu0 0.0
    %1098 = vmatprep.subr.mxu0 0.0
    %1099 = vmatpush1.msra.mxu0 0.0
    %1100 = vmatprep.subr.mxu0 0.0
    %1101 = vmatpush1.msra.mxu0 0.0
    %1102 = vmatprep.subr.mxu0 0.0
    %1103 = vmatpush1.msra.mxu0 0.0
    %1104 = vmatprep.subr.mxu0 0.0
    %1105 = vmatpush1.msra.mxu0 0.0
    %1106 = vmatprep.subr.mxu0 0.0
    %1107 = vmatpush1.msra.mxu0 0.0
    %1108 = vmatprep.subr.mxu0 0.0
    %1109 = vmatpush1.msra.mxu0 0.0
    %1110 = vmatprep.subr.mxu0 0.0
    %1111 = vmatpush1.msra.mxu0 0.0
    %1112 = vmatprep.subr.mxu0 0.0
    %1113 = vmatpush1.msra.mxu0 0.0
    %1114 = vmatprep.subr.mxu0 0.0
    %1115 = vmatpush1.msra.mxu0 0.0
    %1116 = vmatprep.subr.mxu0 0.0
    %1117 = vmatpush1.msra.mxu0 0.0
    %1118 = vmatprep.subr.mxu0 0.0
    %1119 = vmatpush1.msra.mxu0 0.0
    %1120 = vmatprep.subr.mxu0 0.0
    %1121 = vmatpush1.msra.mxu0 0.0
    %1122 = vmatprep.subr.mxu0 0.0
    %1123 = vmatpush1.msra.mxu0 0.0
    %1124 = vmatprep.subr.mxu0 0.0
    %1125 = vmatpush1.msra.mxu0 0.0
    %1126 = vmatprep.subr.mxu0 0.0
    %1127 = vmatpush1.msra.mxu0 0.0
    %1128 = vmatprep.subr.mxu0 0.0
    %1129 = vmatpush1.msra.mxu0 0.0
    %1130 = vmatprep.subr.mxu0 0.0
    %1131 = vmatpush1.msra.mxu0 0.0
    %1132 = vmatprep.subr.mxu0 0.0
    %1133 = vmatpush1.msra.mxu0 0.0
    %1134 = vmatprep.subr.mxu0 0.0
    %1135 = vmatpush1.msra.mxu0 0.0
    %1136 = vmatprep.subr.mxu0 0.0
    %1137 = vmatpush1.msra.mxu0 0.0
    %1138 = vmatprep.subr.mxu0 0.0
    %1139 = vmatpush1.msra.mxu0 0.0
    %1140 = vmatprep.subr.mxu0 0.0
    %1141 = vmatpush1.msra.mxu0 0.0
    %1142 = vmatprep.mubr.f32.mxu0 0.0
    %1143 = vmatmul.mubr.f32.gmra.mrb[0].mxu0 %v1076
    %v1144 = vpop.f32.mrb[0].mxu0
    %v1145 = vadd.f32 0.0, %v1144
    %v1146 = vpop.f32.mrb[0].mxu0
    %v1147 = vadd.f32 0.0, %v1146
    %1148 = vdwg.mxu0
    %v1149 = vadd.f32 %v1073, %v1145
    %v1150 = vmax.f32 %v1149, 0.0
    %1151 = vst [vmem:[%s1072] sm:$0xff] %v1150
    %v1152 = vadd.f32 %v1074, %v1147
    %v1153 = vxor.u32 %v1152, 2147483648
    %v1154 = vmul.f32 %v1153, 1.442695
    %v1155 = vpow.pop %v1154
    %v1156 = vadd.f32 %v1155, 1.0
    %v1157 = vrcp.pop %v1156
    %v1158 = vmul.f32 1.0, %v1157
    %v1159 = vtanh.pop %v1152
    %1160 = vrot.lane.b32.xlu0 %v1069, 32
    %v1161 = vpop.permute.xlu0 %1160
    %v1163 = vmul.f32 %v1158, %v1161
    %1165 = vrot.lane.b32.xlu0 %v1159, 64
    %v1166 = vpop.permute.xlu0 %1165
    %v1168 = vmul.f32 %v1158, %v1166
    %1170 = vrot.lane.b32.xlu0 %v1168, 32
    %v1171 = vpop.permute.xlu0 %1170
    %v1173 = vadd.f32 %v1163, %v1171
    %v1174 = vtanh.pop %v1173
    %1176 = vrot.lane.b32.xlu0 %v1174, 64
    %v1177 = vpop.permute.xlu0 %1176
    %v1179 = vmul.f32 %v1158, %v1177
    %1181 = vrot.lane.b32.xlu0 %v1173, 96
    %v1182 = vpop.permute.xlu0 %1181
    %1185 = vrot.lane.b32.xlu0 %v1179, 64
    %v1186 = vpop.permute.xlu0 %1185
    %v1188 = vsel %vm69, %v1182, %v1186
    %v1189 = vld [vmem:[#allocation2] sm:$0xff]
    %v1190 = vld [vmem:[#allocation2 + $0x10] sm:$0xff]
    %v1191 = vld [vmem:[#allocation2 + $0x20] sm:$0xff]
    %v1192 = vld [vmem:[#allocation2 + $0x30] sm:$0xff]
    %v1193 = vld [vmem:[#allocation2 + $0x40] sm:$0xff]
    %v1194 = vld [vmem:[#allocation2 + $0x50] sm:$0xff]
    %v1195 = vld [vmem:[#allocation2 + $0x60] sm:$0xff]
    %v1196 = vld [vmem:[#allocation2 + $0x70] sm:$0xff]
    %v1197 = vld [vmem:[%s4] sm:$0xff]
    %v1198 = vld [vmem:[%s4 + $0x8] sm:$0xff]
    %v1199 = vld [vmem:[%s4 + $0x10] sm:$0xff]
    %v1200 = vld [vmem:[%s4 + $0x18] sm:$0xff]
    %v1201 = vld [vmem:[%s4 + $0x20] sm:$0xff]
    %v1202 = vld [vmem:[%s4 + $0x28] sm:$0xff]
    %v1203 = vld [vmem:[%s4 + $0x30] sm:$0xff]
    %v1204 = vld [vmem:[%s4 + $0x38] sm:$0xff]
    %v1205 = vld [vmem:[%s4 + $0x40] sm:$0xff]
    %v1206 = vld [vmem:[%s4 + $0x48] sm:$0xff]
    %v1207 = vld [vmem:[%s4 + $0x50] sm:$0xff]
    %v1208 = vld [vmem:[%s4 + $0x58] sm:$0xff]
    %v1209 = vld [vmem:[%s4 + $0x60] sm:$0xff]
    %v1210 = vld [vmem:[%s4 + $0x68] sm:$0xff]
    %v1211 = vld [vmem:[%s4 + $0x70] sm:$0xff]
    %v1212 = vld [vmem:[%s4 + $0x78] sm:$0xff]
    %v1213 = vld [vmem:[%s5] sm:$0x1]
    %v1215 = vlaneseq
    %v1216 = vshrl.u32 %v1215, 7
    %v1217 = vsub.s32 0, %v1216
    %v1218 = vrot.slane %v1213, %v1217
    %1220 = vmatprep.subr.mxu0 0.0
    %1221 = vmatpush1.msra.mxu0 %v1197
    %1222 = vmatprep.subr.mxu0 0.0
    %1223 = vmatpush1.msra.mxu0 %v1198
    %1224 = vmatprep.subr.mxu0 0.0
    %1225 = vmatpush1.msra.mxu0 %v1199
    %1226 = vmatprep.subr.mxu0 0.0
    %1227 = vmatpush1.msra.mxu0 %v1200
    %1228 = vmatprep.subr.mxu0 0.0
    %1229 = vmatpush1.msra.mxu0 %v1201
    %1230 = vmatprep.subr.mxu0 0.0
    %1231 = vmatpush1.msra.mxu0 %v1202
    %1232 = vmatprep.subr.mxu0 0.0
    %1233 = vmatpush1.msra.mxu0 %v1203
    %1234 = vmatprep.subr.mxu0 0.0
    %1235 = vmatpush1.msra.mxu0 %v1204
    %1236 = vmatprep.subr.mxu0 0.0
    %1237 = vmatpush1.msra.mxu0 %v1205
    %1238 = vmatprep.subr.mxu0 0.0
    %1239 = vmatpush1.msra.mxu0 %v1206
    %1240 = vmatprep.subr.mxu0 0.0
    %1241 = vmatpush1.msra.mxu0 %v1207
    %1242 = vmatprep.subr.mxu0 0.0
    %1243 = vmatpush1.msra.mxu0 %v1208
    %1244 = vmatprep.subr.mxu0 0.0
    %1245 = vmatpush1.msra.mxu0 %v1209
    %1246 = vmatprep.subr.mxu0 0.0
    %1247 = vmatpush1.msra.mxu0 %v1210
    %1248 = vmatprep.subr.mxu0 0.0
    %1249 = vmatpush1.msra.mxu0 %v1211
    %1250 = vmatprep.subr.mxu0 0.0
    %1251 = vmatpush1.msra.mxu0 %v1212
    %1252 = vmatprep.subr.mxu0 0.0
    %1253 = vmatpush1.msra.mxu0 0.0
    %1254 = vmatprep.subr.mxu0 0.0
    %1255 = vmatpush1.msra.mxu0 0.0
    %1256 = vmatprep.subr.mxu0 0.0
    %1257 = vmatpush1.msra.mxu0 0.0
    %1258 = vmatprep.subr.mxu0 0.0
    %1259 = vmatpush1.msra.mxu0 0.0
    %1260 = vmatprep.subr.mxu0 0.0
    %1261 = vmatpush1.msra.mxu0 0.0
    %1262 = vmatprep.subr.mxu0 0.0
    %1263 = vmatpush1.msra.mxu0 0.0
    %1264 = vmatprep.subr.mxu0 0.0
    %1265 = vmatpush1.msra.mxu0 0.0
    %1266 = vmatprep.subr.mxu0 0.0
    %1267 = vmatpush1.msra.mxu0 0.0
    %1268 = vmatprep.subr.mxu0 0.0
    %1269 = vmatpush1.msra.mxu0 0.0
    %1270 = vmatprep.subr.mxu0 0.0
    %1271 = vmatpush1.msra.mxu0 0.0
    %1272 = vmatprep.subr.mxu0 0.0
    %1273 = vmatpush1.msra.mxu0 0.0
    %1274 = vmatprep.subr.mxu0 0.0
    %1275 = vmatpush1.msra.mxu0 0.0
    %1276 = vmatprep.subr.mxu0 0.0
    %1277 = vmatpush1.msra.mxu0 0.0
    %1278 = vmatprep.subr.mxu0 0.0
    %1279 = vmatpush1.msra.mxu0 0.0
    %1280 = vmatprep.subr.mxu0 0.0
    %1281 = vmatpush1.msra.mxu0 0.0
    %1282 = vmatprep.subr.mxu0 0.0
    %1283 = vmatpush1.msra.mxu0 0.0
    %1284 = vmatprep.mubr.f32.mxu0 0.0
    %1285 = vmatmul.mubr.f32.gmra.mrb[0].mxu0 %v1189
    %v1286 = vpop.f32.mrb[0].mxu0
    %v1287 = vadd.f32 %v1218, %v1286
    %v1288 = vpop.f32.mrb[0].mxu0
    %1289 = vmatprep.mubr.f32.mxu0 0.0
    %1290 = vmatmul.mubr.f32.gmra.mrb[0].mxu0 %v1190
    %v1291 = vpop.f32.mrb[0].mxu0
    %v1292 = vadd.f32 %v1218, %v1291
    %v1293 = vpop.f32.mrb[0].mxu0
    %1294 = vmatprep.mubr.f32.mxu0 0.0
    %1295 = vmatmul.mubr.f32.gmra.mrb[0].mxu0 %v1191
    %v1296 = vpop.f32.mrb[0].mxu0
    %v1297 = vadd.f32 %v1218, %v1296
    %v1298 = vpop.f32.mrb[0].mxu0
    %1299 = vmatprep.mubr.f32.mxu0 0.0
    %1300 = vmatmul.mubr.f32.gmra.mrb[0].mxu0 %v1192
    %v1301 = vpop.f32.mrb[0].mxu0
    %v1302 = vadd.f32 %v1218, %v1301
    %v1303 = vpop.f32.mrb[0].mxu0
    %1304 = vmatprep.mubr.f32.mxu0 0.0
    %1305 = vmatmul.mubr.f32.gmra.mrb[0].mxu0 %v1193
    %v1306 = vpop.f32.mrb[0].mxu0
    %v1307 = vadd.f32 %v1218, %v1306
    %v1308 = vpop.f32.mrb[0].mxu0
    %1309 = vmatprep.mubr.f32.mxu0 0.0
    %1310 = vmatmul.mubr.f32.gmra.mrb[0].mxu0 %v1194
    %v1311 = vpop.f32.mrb[0].mxu0
    %v1312 = vadd.f32 %v1218, %v1311
    %v1313 = vpop.f32.mrb[0].mxu0
    %1314 = vmatprep.mubr.f32.mxu0 0.0
    %1315 = vmatmul.mubr.f32.gmra.mrb[0].mxu0 %v1195
    %v1316 = vpop.f32.mrb[0].mxu0
    %v1317 = vadd.f32 %v1218, %v1316
    %v1318 = vpop.f32.mrb[0].mxu0
    %1319 = vmatprep.mubr.f32.mxu0 0.0
    %1320 = vmatmul.mubr.f32.gmra.mrb[0].mxu0 %v1196
    %v1321 = vpop.f32.mrb[0].mxu0
    %v1322 = vadd.f32 %v1218, %v1321
    %v1323 = vpop.f32.mrb[0].mxu0
    %1324 = vdwg.mxu0
    %vm1325 = vcmask 15360
    %v1326 = vsel %vm1325, %v1287, -inf
    %1327 = vmax.xlane.f32.xlu0 %v1326
    %v1328 = vpop.xlane.xlu0 %1327
    %v1329 = vsel %vm1325, %v1292, -inf
    %1330 = vmax.xlane.f32.xlu0 %v1329
    %v1331 = vpop.xlane.xlu0 %1330
    %v1332 = vsel %vm1325, %v1297, -inf
    %1333 = vmax.xlane.f32.xlu0 %v1332
    %v1334 = vpop.xlane.xlu0 %1333
    %v1335 = vsel %vm1325, %v1302, -inf
    %1336 = vmax.xlane.f32.xlu0 %v1335
    %v1337 = vpop.xlane.xlu0 %1336
    %v1338 = vsel %vm1325, %v1307, -inf
    %1339 = vmax.xlane.f32.xlu0 %v1338
    %v1340 = vpop.xlane.xlu0 %1339
    %v1341 = vsel %vm1325, %v1312, -inf
    %1342 = vmax.xlane.f32.xlu0 %v1341
    %v1343 = vpop.xlane.xlu0 %1342
    %v1344 = vsel %vm1325, %v1317, -inf
    %1345 = vmax.xlane.f32.xlu0 %v1344
    %v1346 = vpop.xlane.xlu0 %1345
    %v1347 = vsel %vm1325, %v1322, -inf
    %1348 = vmax.xlane.f32.xlu0 %v1347
    %v1349 = vpop.xlane.xlu0 %1348
    %v1350 = vsub.f32 %v1287, %v1328
    %v1351 = vsub.f32 %v1292, %v1331
    %v1352 = vsub.f32 %v1297, %v1334
    %v1353 = vsub.f32 %v1302, %v1337
    %v1354 = vsub.f32 %v1307, %v1340
    %v1355 = vsub.f32 %v1312, %v1343
    %v1356 = vsub.f32 %v1317, %v1346
    %v1357 = vsub.f32 %v1322, %v1349
    %v1358 = vmul.f32 %v1350, 1.442695
    %v1359 = vpow.pop %v1358
    %v1360 = vmul.f32 %v1351, 1.442695
    %v1361 = vpow.pop %v1360
    %v1362 = vmul.f32 %v1352, 1.442695
    %v1363 = vpow.pop %v1362
    %v1364 = vmul.f32 %v1353, 1.442695
    %v1365 = vpow.pop %v1364
    %v1366 = vmul.f32 %v1354, 1.442695
    %v1367 = vpow.pop %v1366
    %v1368 = vmul.f32 %v1355, 1.442695
    %v1369 = vpow.pop %v1368
    %v1370 = vmul.f32 %v1356, 1.442695
    %v1371 = vpow.pop %v1370
    %v1372 = vmul.f32 %v1357, 1.442695
    %v1373 = vpow.pop %v1372
    %v1374 = vsel %vm1325, %v1359, 0.0
    %1375 = vadd.xlane.f32.xlu0 %v1374
    %v1376 = vpop.xlane.xlu0 %1375
    %v1377 = vsel %vm1325, %v1361, 0.0
    %1378 = vadd.xlane.f32.xlu0 %v1377
    %v1379 = vpop.xlane.xlu0 %1378
    %v1380 = vsel %vm1325, %v1363, 0.0
    %1381 = vadd.xlane.f32.xlu0 %v1380
    %v1382 = vpop.xlane.xlu0 %1381
    %v1383 = vsel %vm1325, %v1365, 0.0
    %1384 = vadd.xlane.f32.xlu0 %v1383
    %v1385 = vpop.xlane.xlu0 %1384
    %v1386 = vsel %vm1325, %v1367, 0.0
    %1387 = vadd.xlane.f32.xlu0 %v1386
    %v1388 = vpop.xlane.xlu0 %1387
    %v1389 = vsel %vm1325, %v1369, 0.0
    %1390 = vadd.xlane.f32.xlu0 %v1389
    %v1391 = vpop.xlane.xlu0 %1390
    %v1392 = vsel %vm1325, %v1371, 0.0
    %1393 = vadd.xlane.f32.xlu0 %v1392
    %v1394 = vpop.xlane.xlu0 %1393
    %v1395 = vsel %vm1325, %v1373, 0.0
    %1396 = vadd.xlane.f32.xlu0 %v1395
    %v1397 = vpop.xlane.xlu0 %1396
    %v1398 = vlog2.pop %v1376
    %v1399 = vmul.f32 %v1398, 0.6931472
    %v1400 = vlog2.pop %v1379
    %v1401 = vmul.f32 %v1400, 0.6931472
    %v1402 = vlog2.pop %v1382
    %v1403 = vmul.f32 %v1402, 0.6931472
    %v1404 = vlog2.pop %v1385
    %v1405 = vmul.f32 %v1404, 0.6931472
    %v1406 = vlog2.pop %v1388
    %v1407 = vmul.f32 %v1406, 0.6931472
    %v1408 = vlog2.pop %v1391
    %v1409 = vmul.f32 %v1408, 0.6931472
    %v1410 = vlog2.pop %v1394
    %v1411 = vmul.f32 %v1410, 0.6931472
    %v1412 = vlog2.pop %v1397
    %v1413 = vmul.f32 %v1412, 0.6931472
    %v1414 = vadd.f32 %v1328, %v1399
    %v1415 = vadd.f32 %v1331, %v1401
    %v1416 = vadd.f32 %v1334, %v1403
    %v1417 = vadd.f32 %v1337, %v1405
    %v1418 = vadd.f32 %v1340, %v1407
    %v1419 = vadd.f32 %v1343, %v1409
    %v1420 = vadd.f32 %v1346, %v1411
    %v1421 = vadd.f32 %v1349, %v1413
    %v1422 = vsel %vm1325, %v1287, 0.0
    %1423 = vadd.xlane.f32.xlu0 %v1422
    %v1424 = vpop.xlane.xlu0 %1423
    %v1425 = vsel %vm1325, %v1292, 0.0
    %1426 = vadd.xlane.f32.xlu0 %v1425
    %v1427 = vpop.xlane.xlu0 %1426
    %v1428 = vsel %vm1325, %v1297, 0.0
    %1429 = vadd.xlane.f32.xlu0 %v1428
    %v1430 = vpop.xlane.xlu0 %1429
    %v1431 = vsel %vm1325, %v1302, 0.0
    %1432 = vadd.xlane.f32.xlu0 %v1431
    %v1433 = vpop.xlane.xlu0 %1432
    %v1434 = vsel %vm1325, %v1307, 0.0
    %1435 = vadd.xlane.f32.xlu0 %v1434
    %v1436 = vpop.xlane.xlu0 %1435
    %v1437 = vsel %vm1325, %v1312, 0.0
    %1438 = vadd.xlane.f32.xlu0 %v1437
    %v1439 = vpop.xlane.xlu0 %1438
    %v1440 = vsel %vm1325, %v1317, 0.0
    %1441 = vadd.xlane.f32.xlu0 %v1440
    %v1442 = vpop.xlane.xlu0 %1441
    %v1443 = vsel %vm1325, %v1322, 0.0
    %1444 = vadd.xlane.f32.xlu0 %v1443
    %v1445 = vpop.xlane.xlu0 %1444
    %v1446 = vmul.f32 %v1424, 0.5
    %v1447 = vmul.f32 %v1427, 0.5
    %v1448 = vmul.f32 %v1430, 0.5
    %v1449 = vmul.f32 %v1433, 0.5
    %v1450 = vmul.f32 %v1436, 0.5
    %v1451 = vmul.f32 %v1439, 0.5
    %v1452 = vmul.f32 %v1442, 0.5
    %v1453 = vmul.f32 %v1445, 0.5
    %v1454 = vsub.f32 %v1414, %v1446
    %v1455 = vsub.f32 %v1415, %v1447
    %v1456 = vsub.f32 %v1416, %v1448
    %v1457 = vsub.f32 %v1417, %v1449
    %v1458 = vsub.f32 %v1418, %v1450
    %v1459 = vsub.f32 %v1419, %v1451
    %v1460 = vsub.f32 %v1420, %v1452
    %v1461 = vsub.f32 %v1421, %v1453
    %v1462 = vld [vmem:[%s10] sm:$0xff]
    %v1463 = vld [vmem:[%s10 + $0x8] sm:$0xff]
    %v1464 = vld [vmem:[%s10 + $0x10] sm:$0xff]
    %v1465 = vld [vmem:[%s10 + $0x18] sm:$0xff]
    %v1466 = vld [vmem:[%s10 + $0x20] sm:$0xff]
    %v1467 = vld [vmem:[%s10 + $0x28] sm:$0xff]
    %v1468 = vld [vmem:[%s10 + $0x30] sm:$0xff]
    %v1469 = vld [vmem:[%s10 + $0x38] sm:$0xff]
    %v1470 = vmul.f32 %v1454, %v1462
    %v1471 = vmul.f32 %v1455, %v1463
    %v1472 = vmul.f32 %v1456, %v1464
    %v1473 = vmul.f32 %v1457, %v1465
    %v1474 = vmul.f32 %v1458, %v1466
    %v1475 = vmul.f32 %v1459, %v1467
    %v1476 = vmul.f32 %v1460, %v1468
    %v1477 = vmul.f32 %v1461, %v1469
    %vm1478 = vcmask 7168
    %v1479 = vsel %vm1478, %v1470, 0.0
    %v1480 = vsel %vm1478, %v1471, 0.0
    %v1481 = vadd.f32 %v1479, %v1480
    %v1482 = vsel %vm1478, %v1472, 0.0
    %v1483 = vadd.f32 %v1481, %v1482
    %v1484 = vsel %vm1478, %v1473, 0.0
    %v1485 = vadd.f32 %v1483, %v1484
    %v1486 = vsel %vm1478, %v1474, 0.0
    %v1487 = vadd.f32 %v1485, %v1486
    %v1488 = vsel %vm1478, %v1475, 0.0
    %v1489 = vadd.f32 %v1487, %v1488
    %v1490 = vsel %vm1478, %v1476, 0.0
    %v1491 = vadd.f32 %v1489, %v1490
    %v1492 = vsel %vm1478, %v1477, 0.0
    %v1493 = vadd.f32 %v1491, %v1492
    %1494 = vadd.xlane.f32.xlu0 %v1493
    %v1495 = vpop.xlane.xlu0 %1494
    %v1496 = vrot.slane %v1495, 4
    %v1497 = vadd.f32 %v1495, %v1496
    %v1498 = vrot.slane %v1497, 2
    %v1499 = vadd.f32 %v1497, %v1498
    %v1500 = vrot.slane %v1499, 1
    %v1501 = vadd.f32 %v1499, %v1500
    %s1502 = vtos %v1501
    %v1503 = vstv %s1502
    %v1504 = vmul.f32 %v1503, 0.25
    %vm1505 = vcmask 0
    %1506 = vst.msk [vmem:[#allocation3] sm:$0x1] %vm1505, %v1504
    %v1507 = vld [vmem:[%s6] sm:$0xff]
    %v1508 = vld [vmem:[%s6 + $0x8] sm:$0xff]
    %v1509 = vld [vmem:[%s6 + $0x10] sm:$0xff]
    %v1510 = vld [vmem:[%s6 + $0x18] sm:$0xff]
    %v1511 = vld [vmem:[%s7] sm:$0x1]
    %v1513 = vlaneseq
    %v1514 = vshrl.u32 %v1513, 7
    %v1515 = vsub.s32 0, %v1514
    %v1516 = vrot.slane %v1511, %v1515
    %1519 = vrot.lane.b32.xlu0 %v1188, 96
    %v1520 = vpop.permute.xlu0 %1519
    %v1521 = vsel %vm69, %v1520, 0
    %1523 = vmatprep.subr.mxu0 0.0
    %1524 = vmatpush1.msra.mxu0 %v1507
    %1525 = vmatprep.subr.mxu0 0.0
    %1526 = vmatpush1.msra.mxu0 %v1508
    %1527 = vmatprep.subr.mxu0 0.0
    %1528 = vmatpush1.msra.mxu0 %v1509
    %1529 = vmatprep.subr.mxu0 0.0
    %1530 = vmatpush1.msra.mxu0 %v1510
    %1531 = vmatprep.subr.mxu0 0.0
    %1532 = vmatpush1.msra.mxu0 0.0
    %1533 = vmatprep.subr.mxu0 0.0
    %1534 = vmatpush1.msra.mxu0 0.0
    %1535 = vmatprep.subr.mxu0 0.0
    %1536 = vmatpush1.msra.mxu0 0.0
    %1537 = vmatprep.subr.mxu0 0.0
    %1538 = vmatpush1.msra.mxu0 0.0
    %1539 = vmatprep.subr.mxu0 0.0
    %1540 = vmatpush1.msra.mxu0 0.0
    %1541 = vmatprep.subr.mxu0 0.0
    %1542 = vmatpush1.msra.mxu0 0.0
    %1543 = vmatprep.subr.mxu0 0.0
    %1544 = vmatpush1.msra.mxu0 0.0
    %1545 = vmatprep.subr.mxu0 0.0
    %1546 = vmatpush1.msra.mxu0 0.0
    %1547 = vmatprep.subr.mxu0 0.0
    %1548 = vmatpush1.msra.mxu0 0.0
    %1549 = vmatprep.subr.mxu0 0.0
    %1550 = vmatpush1.msra.mxu0 0.0
    %1551 = vmatprep.subr.mxu0 0.0
    %1552 = vmatpush1.msra.mxu0 0.0
    %1553 = vmatprep.subr.mxu0 0.0
    %1554 = vmatpush1.msra.mxu0 0.0
    %1555 = vmatprep.subr.mxu0 0.0
    %1556 = vmatpush1.msra.mxu0 0.0
    %1557 = vmatprep.subr.mxu0 0.0
    %1558 = vmatpush1.msra.mxu0 0.0
    %1559 = vmatprep.subr.mxu0 0.0
    %1560 = vmatpush1.msra.mxu0 0.0
    %1561 = vmatprep.subr.mxu0 0.0
    %1562 = vmatpush1.msra.mxu0 0.0
    %1563 = vmatprep.subr.mxu0 0.0
    %1564 = vmatpush1.msra.mxu0 0.0
    %1565 = vmatprep.subr.mxu0 0.0
    %1566 = vmatpush1.msra.mxu0 0.0
    %1567 = vmatprep.subr.mxu0 0.0
    %1568 = vmatpush1.msra.mxu0 0.0
    %1569 = vmatprep.subr.mxu0 0.0
    %1570 = vmatpush1.msra.mxu0 0.0
    %1571 = vmatprep.subr.mxu0 0.0
    %1572 = vmatpush1.msra.mxu0 0.0
    %1573 = vmatprep.subr.mxu0 0.0
    %1574 = vmatpush1.msra.mxu0 0.0
    %1575 = vmatprep.subr.mxu0 0.0
    %1576 = vmatpush1.msra.mxu0 0.0
    %1577 = vmatprep.subr.mxu0 0.0
    %1578 = vmatpush1.msra.mxu0 0.0
    %1579 = vmatprep.subr.mxu0 0.0
    %1580 = vmatpush1.msra.mxu0 0.0
    %1581 = vmatprep.subr.mxu0 0.0
    %1582 = vmatpush1.msra.mxu0 0.0
    %1583 = vmatprep.subr.mxu0 0.0
    %1584 = vmatpush1.msra.mxu0 0.0
    %1585 = vmatprep.subr.mxu0 0.0
    %1586 = vmatpush1.msra.mxu0 0.0
    %1587 = vmatprep.mubr.f32.mxu0 0.0
    %1588 = vmatmul.mubr.f32.gmra.mrb[0].mxu0 %v1521
    %v1589 = vpop.f32.mrb[0].mxu0
    %v1590 = vadd.f32 %v1516, %v1589
    %v1591 = vpop.f32.mrb[0].mxu0
    %1592 = vdwg.mxu0
    %v1593 = vmax.f32 %v1590, 0.0
    %v1594 = vld [vmem:[%s8] sm:$0xff]
    %v1595 = vld [vmem:[%s8 + $0x8] sm:$0xff]
    %v1596 = vld [vmem:[%s8 + $0x10] sm:$0xff]
    %v1597 = vld [vmem:[%s8 + $0x18] sm:$0xff]
    %v1598 = vld [vmem:[%s9] sm:$0x1]
    %v1600 = vlaneseq
    %v1601 = vshrl.u32 %v1600, 7
    %v1602 = vsub.s32 0, %v1601
    %v1603 = vrot.slane %v1598, %v1602
    %v1606 = vsel %vm69, %v1593, 0
    %1608 = vmatprep.subr.mxu0 0.0
    %1609 = vmatpush1.msra.mxu0 %v1594
    %1610 = vmatprep.subr.mxu0 0.0
    %1611 = vmatpush1.msra.mxu0 %v1595
    %1612 = vmatprep.subr.mxu0 0.0
    %1613 = vmatpush1.msra.mxu0 %v1596
    %1614 = vmatprep.subr.mxu0 0.0
    %1615 = vmatpush1.msra.mxu0 %v1597
    %1616 = vmatprep.subr.mxu0 0.0
    %1617 = vmatpush1.msra.mxu0 0.0
    %1618 = vmatprep.subr.mxu0 0.0
    %1619 = vmatpush1.msra.mxu0 0.0
    %1620 = vmatprep.subr.mxu0 0.0
    %1621 = vmatpush1.msra.mxu0 0.0
    %1622 = vmatprep.subr.mxu0 0.0
    %1623 = vmatpush1.msra.mxu0 0.0
    %1624 = vmatprep.subr.mxu0 0.0
    %1625 = vmatpush1.msra.mxu0 0.0
    %1626 = vmatprep.subr.mxu0 0.0
    %1627 = vmatpush1.msra.mxu0 0.0
    %1628 = vmatprep.subr.mxu0 0.0
    %1629 = vmatpush1.msra.mxu0 0.0
    %1630 = vmatprep.subr.mxu0 0.0
    %1631 = vmatpush1.msra.mxu0 0.0
    %1632 = vmatprep.subr.mxu0 0.0
    %1633 = vmatpush1.msra.mxu0 0.0
    %1634 = vmatprep.subr.mxu0 0.0
    %1635 = vmatpush1.msra.mxu0 0.0
    %1636 = vmatprep.subr.mxu0 0.0
    %1637 = vmatpush1.msra.mxu0 0.0
    %1638 = vmatprep.subr.mxu0 0.0
    %1639 = vmatpush1.msra.mxu0 0.0
    %1640 = vmatprep.subr.mxu0 0.0
    %1641 = vmatpush1.msra.mxu0 0.0
    %1642 = vmatprep.subr.mxu0 0.0
    %1643 = vmatpush1.msra.mxu0 0.0
    %1644 = vmatprep.subr.mxu0 0.0
    %1645 = vmatpush1.msra.mxu0 0.0
    %1646 = vmatprep.subr.mxu0 0.0
    %1647 = vmatpush1.msra.mxu0 0.0
    %1648 = vmatprep.subr.mxu0 0.0
    %1649 = vmatpush1.msra.mxu0 0.0
    %1650 = vmatprep.subr.mxu0 0.0
    %1651 = vmatpush1.msra.mxu0 0.0
    %1652 = vmatprep.subr.mxu0 0.0
    %1653 = vmatpush1.msra.mxu0 0.0
    %1654 = vmatprep.subr.mxu0 0.0
    %1655 = vmatpush1.msra.mxu0 0.0
    %1656 = vmatprep.subr.mxu0 0.0
    %1657 = vmatpush1.msra.mxu0 0.0
    %1658 = vmatprep.subr.mxu0 0.0
    %1659 = vmatpush1.msra.mxu0 0.0
    %1660 = vmatprep.subr.mxu0 0.0
    %1661 = vmatpush1.msra.mxu0 0.0
    %1662 = vmatprep.subr.mxu0 0.0
    %1663 = vmatpush1.msra.mxu0 0.0
    %1664 = vmatprep.subr.mxu0 0.0
    %1665 = vmatpush1.msra.mxu0 0.0
    %1666 = vmatprep.subr.mxu0 0.0
    %1667 = vmatpush1.msra.mxu0 0.0
    %1668 = vmatprep.subr.mxu0 0.0
    %1669 = vmatpush1.msra.mxu0 0.0
    %1670 = vmatprep.subr.mxu0 0.0
    %1671 = vmatpush1.msra.mxu0 0.0
    %1672 = vmatprep.mubr.f32.mxu0 0.0
    %1673 = vmatmul.mubr.f32.gmra.mrb[0].mxu0 %v1606
    %v1674 = vpop.f32.mrb[0].mxu0
    %v1675 = vadd.f32 %v1603, %v1674
    %v1676 = vpop.f32.mrb[0].mxu0
    %1677 = vdwg.mxu0
    %v1678 = vsel %vm1325, %v1675, -inf
    %1679 = vmax.xlane.f32.xlu0 %v1678
    %v1680 = vpop.xlane.xlu0 %1679
    %v1681 = vsub.f32 %v1675, %v1680
    %v1682 = vmul.f32 %v1681, 1.442695
    %v1683 = vpow.pop %v1682
    %v1684 = vsel %vm1325, %v1683, 0.0
    %1685 = vadd.xlane.f32.xlu0 %v1684
    %v1686 = vpop.xlane.xlu0 %1685
    %v1687 = vrcp.pop %v1686
    %v1688 = vmul.f32 %v1683, %v1687
    %1689 = vst.msk [vmem:[%s11] sm:$0xff] %vm1325, %v1688
    // Predicated region
    $region46: #{model3_supervised_pallas.1} parent=1 // pred_check
      _
    $region47: #{model3_supervised_pallas.1} parent=1 // pred_check_branch
      %1691 = sbr.rel (0) target = $region49
    $region48: #{model3_supervised_pallas.1} parent=1 // pred_region
      _
    $region49: #{model3_supervised_pallas.1} parent=1 // pred_fallthru
      _
    // Predicated region
    $region50: #{model3_supervised_pallas.1} parent=1 // pred_check
      _
    $region51: #{model3_supervised_pallas.1} parent=1 // pred_check_branch
      %1693 = sbr.rel (0) target = $region53
    $region52: #{model3_supervised_pallas.1} parent=1 // pred_region
      %s1695 = ssub.s32 16, 16
      %1696 = vsyncadd [#allocation4], %s1695
      %s1698 = sshll.u32 [#allocation3], 4
      %s1699 = int_to_ptr.vmem [resolvable:$true] %s1698
      %1701 = dma.vmem_to_hbm [thread:$0]  %s1699, 16, %s12, [#allocation4]
    $region53: #{model3_supervised_pallas.1} parent=1 // pred_fallthru
      _
    // Predicated region
    $region54: #{model3_supervised_pallas.1} parent=1 // pred_check
      _
    $region55: #{model3_supervised_pallas.1} parent=1 // pred_check_branch
      %1703 = sbr.rel (0) target = $region57
    $region56: #{model3_supervised_pallas.1} parent=1 // pred_region
      _
    $region57: #{model3_supervised_pallas.1} parent=1 // pred_fallthru
      _
    // Predicated region
    $region58: #{model3_supervised_pallas.1} parent=1 // pred_check
      _
    $region59: #{model3_supervised_pallas.1} parent=1 // pred_check_branch
      %1705 = sbr.rel (0) target = $region61
    $region60: #{model3_supervised_pallas.1} parent=1 // pred_region
      %1706 = dma.done [#allocation4], 16
    $region61: #{model3_supervised_pallas.1} parent=1 // pred_fallthru
      _
    %1707 = vsyncpa [#allocation4], 1

</llo_original>
